<compile_context>
chip_gen: v7x
topology: tpu7x:2x2x1
jax: 0.10.0
libtpu: 0.0.40
codegen_flags: <defaults>
</compile_context>

<pallas_src>
import math

import jax
import jax.numpy as jnp
from jax import lax
from jax.experimental import pallas as pl
from jax.experimental.pallas import tpu as pltpu

OC_PAD = 128  # pad output channels 32 -> 128: lane-dense stores + full MXU column width


# ---------------------------------------------------------------------------
# Pallas kernel: in-kernel im2col (VMEM scratch) + one MXU matmul + bias epilogue
# ---------------------------------------------------------------------------
def _make_conv_kernel(N, H, W, KH, KW, OH, OW, OCp):
    def kernel(x_ref, w_ref, b_ref, o_ref, patch_ref):
        # ---- Phase 1: build im2col patch matrix [M, KH*KW] in VMEM scratch ----------
        # All indices are static Python ints (fully unrolled); these slab copies run
        # up front, off the matmul critical path.
        for n in range(N):
            for ow in range(OW):
                base = (n * OW + ow) * OH
                for kh in range(KH):
                    patch_ref[pl.ds(base, OH), pl.ds(kh * KW, KW)] = (
                        x_ref[n, pl.ds(kh, OH), pl.ds(ow, KW)]
                    )

        # ---- Phase 2: single matmul (bf16 operands, f32 accumulation) + bias --------
        patch = patch_ref[...].astype(jnp.bfloat16)            # [M, KH*KW]
        acc = jnp.dot(patch, w_ref[...],
                      preferred_element_type=jnp.float32)      # [M, OCp] f32
        brow = b_ref[...]                                      # [1, OCp] (hoisted)
        # Single fused f32 add + one unmasked, lane/sublane-dense [M, OCp] store.
        o_ref[...] = (acc + brow).astype(o_ref.dtype)

    return kernel


# ---------------------------------------------------------------------------
# One-time parameter prep (hoisted out of the per-call path, per perf review)
# ---------------------------------------------------------------------------
def prepare_params(weight, bias, ocp=OC_PAD):
    """weight [OC,1,KH,KW] f32, bias [OC] f32 ->
       w_p [KH*KW, OCp] bf16 (kh-major / kw-minor rows, zero-padded channels),
       b_p [1, OCp] f32 (zero-padded)."""
    OC, _, KH, KW = weight.shape
    w = jnp.transpose(weight[:, 0], (1, 2, 0)).reshape(KH * KW, OC)   # [KH*KW, OC]
    w = jnp.pad(w, ((0, 0), (0, ocp - OC))).astype(jnp.bfloat16)      # [KH*KW, OCp]
    b = jnp.pad(bias, (0, ocp - OC)).reshape(1, ocp).astype(jnp.float32)
    return w, b


def conv2d_via_pallas(x, w_p, b_p, *, oc, kh, kw):
    """Conv2d(1, oc, (kh, kw), stride=1, padding=0) with pre-prepared params.

    x:   [N, 1, H, W] float32 (NCHW, matching PyTorch)
    w_p: [kh*kw, OCp] bfloat16
    b_p: [1, OCp] float32
    returns [N, oc, OH, OW] float32
    """
    N, _, H, W = x.shape
    KHKW, OCp = w_p.shape
    OH, OW = H - kh + 1, W - kw + 1
    M = N * OW * OH                                  # 216 here; divisible by 8

    x3 = x[:, 0]                                     # [N, H, W]  (~5 KB)
    kernel = _make_conv_kernel(N, H, W, kh, kw, OH, OW, OCp)

    out = pl.pallas_call(
        kernel,
        out_shape=jax.ShapeDtypeStruct((M, OCp), jnp.float32),
        grid=(1,),  # whole problem fits trivially in VMEM on v5e/v6e/v7x at this size
        in_specs=[
            pl.BlockSpec((N, H, W), lambda i: (0, 0, 0)),
            pl.BlockSpec((KHKW, OCp), lambda i: (0, 0)),
            pl.BlockSpec((1, OCp), lambda i: (0, 0)),
        ],
        out_specs=pl.BlockSpec((M, OCp), lambda i: (0, 0)),
        scratch_shapes=[pltpu.VMEM((M, KHKW), jnp.float32)],
        compiler_params=pltpu.CompilerParams(dimension_semantics=("arbitrary",)),
    )(x3, w_p, b_p)

    # [M, OCp] -> [N, OW, OH, OC] -> NCHW.  No downstream consumer here, so the layout
    # fixup stays in the wrapper (cheap leading-axis permute + slice of padded channels).
    out = out.reshape(N, OW, OH, OCp)[..., :oc]
    return jnp.transpose(out, (0, 3, 2, 1))          # [N, OC, OH, OW]


# ---------------------------------------------------------------------------
# Deterministic parameter init (mimics nn.init.orthogonal_ with relu gain)
# ---------------------------------------------------------------------------
def orthogonal_init(key, shape, gain):
    rows = shape[0]
    cols = int(math.prod(shape[1:]))
    n, m = (rows, cols) if rows >= cols else (cols, rows)
    a = jax.random.normal(key, (n, m), dtype=jnp.float32)
    q, r = jnp.linalg.qr(a)
    d = jnp.diagonal(r)
    sign = jnp.where(d == 0, 1.0, jnp.sign(d))       # guard against zero diagonal
    q = q * sign
    if rows < cols:
        q = q.T
    return (gain * q[:rows, :cols]).reshape(shape)


def make_params(key, out_channels=32, in_channels=1, kh=5, kw=32):
    kw_key, kb_key = jax.random.split(key)
    gain = math.sqrt(2.0)                            # init.calculate_gain('relu')
    weight = orthogonal_init(kw_key, (out_channels, in_channels, kh, kw), gain)
    fan_in = in_channels * kh * kw
    bound = 1.0 / math.sqrt(fan_in)                  # PyTorch Conv2d default bias init
    bias = jax.random.uniform(kb_key, (out_channels,), jnp.float32, -bound, bound)
    return weight, bias


# ---------------------------------------------------------------------------
if __name__ == "__main__":
    key = jax.random.PRNGKey(0)
    k_x, k_p = jax.random.split(key)

    # Small input consistent with Conv2d(1, 32, (5, 32)): need H >= 5, W >= 32.
    N, C, H, W = 2, 1, 16, 40
    x = jax.random.normal(k_x, (N, C, H, W), dtype=jnp.float32)

    weight, bias = make_params(k_p)
    w_p, b_p = prepare_params(weight, bias)          # one-time prep (hoisted)

    conv = jax.jit(lambda xx, ww, bb: conv2d_via_pallas(xx, ww, bb, oc=32, kh=5, kw=32))
    out = jax.block_until_ready(conv(x, w_p, b_p))

    # Shape check: NCHW output [N, 32, H-4, W-31]
    assert out.shape == (N, 32, H - 5 + 1, W - 32 + 1), out.shape

    # Tight check: reference with the same bf16-rounded operands / f32 accumulation.
    ref_bf16 = lax.conv_general_dilated(
        x.astype(jnp.bfloat16), weight.astype(jnp.bfloat16),
        window_strides=(1, 1), padding="VALID",
        dimension_numbers=("NCHW", "OIHW", "NCHW"),
        preferred_element_type=jnp.float32,
    ) + bias.reshape(1, -1, 1, 1)
    err_bf16 = float(jnp.max(jnp.abs(out - ref_bf16)))
    assert jnp.allclose(out, ref_bf16, rtol=2e-3, atol=2e-3), err_bf16

    # Sanity check vs. full-f32 reference (bf16 input quantization dominates the diff).
    ref_f32 = lax.conv_general_dilated(
        x, weight, window_strides=(1, 1), padding="VALID",
        dimension_numbers=("NCHW", "OIHW", "NCHW"),
    ) + bias.reshape(1, -1, 1, 1)
    err_f32 = float(jnp.max(jnp.abs(out - ref_f32)))
    assert jnp.allclose(out, ref_f32, rtol=3e-2, atol=3e-2), err_f32

    print("KERNEL_OK")
</pallas_src>

<mosaic_0001>
module attributes {stable_mosaic.version = 11 : i64} {
  func.func @kernel(%arg0: i32, %arg1: memref<2x16x40xf32, #tpu.memory_space<vmem>>, %arg2: memref<160x128xbf16, #tpu.memory_space<vmem>>, %arg3: memref<1x128xf32, #tpu.memory_space<vmem>>, %arg4: memref<216x128xf32, #tpu.memory_space<vmem>>, %arg5: memref<216x160xf32, #tpu.memory_space<vmem>>) attributes {dimension_semantics = [#tpu.dimension_semantics<arbitrary>], iteration_bounds = array<i64: 1>, scalar_prefetch = 0 : i64, scratch_operands = 1 : i64, tpu.core_type = #tpu.core_type<tc>, window_params = [{pipeline_mode = #tpu.pipeline_mode<synchronous>, transform_indices = @transform_0, window_bounds = array<i64: 2, 16, 40>}, {pipeline_mode = #tpu.pipeline_mode<synchronous>, transform_indices = @transform_1, window_bounds = array<i64: 160, 128>}, {pipeline_mode = #tpu.pipeline_mode<synchronous>, transform_indices = @transform_2, window_bounds = array<i64: 1, 128>}, {pipeline_mode = #tpu.pipeline_mode<synchronous>, transform_indices = @transform_3, window_bounds = array<i64: 216, 128>}]} {
    %c0 = arith.constant 0 : index
    %c0_0 = arith.constant 0 : index
    %c0_1 = arith.constant 0 : index
    %0 = vector.load %arg1[%c0, %c0_0, %c0_1] : memref<2x16x40xf32, #tpu.memory_space<vmem>>, vector<1x12x32xf32>
    %1 = vector.shape_cast %0 : vector<1x12x32xf32> to vector<12x32xf32>
    %c0_2 = arith.constant 0 : index
    %c0_3 = arith.constant 0 : index
    %2 = vector.load %arg5[%c0_2, %c0_3] : memref<216x160xf32, #tpu.memory_space<vmem>>, vector<12x32xf32>
    tpu.vector_store %arg5[%c0_2, %c0_3], %1 {strides = array<i32>} : memref<216x160xf32, #tpu.memory_space<vmem>>, vector<12x32xf32>,
    %c0_4 = arith.constant 0 : index
    %c1 = arith.constant 1 : index
    %c0_5 = arith.constant 0 : index
    %3 = vector.load %arg1[%c0_4, %c1, %c0_5] : memref<2x16x40xf32, #tpu.memory_space<vmem>>, vector<1x12x32xf32>
    %4 = vector.shape_cast %3 : vector<1x12x32xf32> to vector<12x32xf32>
    %c0_6 = arith.constant 0 : index
    %c32 = arith.constant 32 : index
    %5 = vector.load %arg5[%c0_6, %c32] : memref<216x160xf32, #tpu.memory_space<vmem>>, vector<12x32xf32>
    tpu.vector_store %arg5[%c0_6, %c32], %4 {strides = array<i32>} : memref<216x160xf32, #tpu.memory_space<vmem>>, vector<12x32xf32>,
    %c0_7 = arith.constant 0 : index
    %c2 = arith.constant 2 : index
    %c0_8 = arith.constant 0 : index
    %6 = vector.load %arg1[%c0_7, %c2, %c0_8] : memref<2x16x40xf32, #tpu.memory_space<vmem>>, vector<1x12x32xf32>
    %7 = vector.shape_cast %6 : vector<1x12x32xf32> to vector<12x32xf32>
    %c0_9 = arith.constant 0 : index
    %c64 = arith.constant 64 : index
    %8 = vector.load %arg5[%c0_9, %c64] : memref<216x160xf32, #tpu.memory_space<vmem>>, vector<12x32xf32>
    tpu.vector_store %arg5[%c0_9, %c64], %7 {strides = array<i32>} : memref<216x160xf32, #tpu.memory_space<vmem>>, vector<12x32xf32>,
    %c0_10 = arith.constant 0 : index
    %c3 = arith.constant 3 : index
    %c0_11 = arith.constant 0 : index
    %9 = vector.load %arg1[%c0_10, %c3, %c0_11] : memref<2x16x40xf32, #tpu.memory_space<vmem>>, vector<1x12x32xf32>
    %10 = vector.shape_cast %9 : vector<1x12x32xf32> to vector<12x32xf32>
    %c0_12 = arith.constant 0 : index
    %c96 = arith.constant 96 : index
    %11 = vector.load %arg5[%c0_12, %c96] : memref<216x160xf32, #tpu.memory_space<vmem>>, vector<12x32xf32>
    tpu.vector_store %arg5[%c0_12, %c96], %10 {strides = array<i32>} : memref<216x160xf32, #tpu.memory_space<vmem>>, vector<12x32xf32>,
    %c0_13 = arith.constant 0 : index
    %c4 = arith.constant 4 : index
    %c0_14 = arith.constant 0 : index
    %12 = vector.load %arg1[%c0_13, %c4, %c0_14] : memref<2x16x40xf32, #tpu.memory_space<vmem>>, vector<1x12x32xf32>
    %13 = vector.shape_cast %12 : vector<1x12x32xf32> to vector<12x32xf32>
    %c0_15 = arith.constant 0 : index
    %c128 = arith.constant 128 : index
    %14 = vector.load %arg5[%c0_15, %c128] : memref<216x160xf32, #tpu.memory_space<vmem>>, vector<12x32xf32>
    tpu.vector_store %arg5[%c0_15, %c128], %13 {strides = array<i32>} : memref<216x160xf32, #tpu.memory_space<vmem>>, vector<12x32xf32>,
    %c0_16 = arith.constant 0 : index
    %c0_17 = arith.constant 0 : index
    %c1_18 = arith.constant 1 : index
    %15 = vector.load %arg1[%c0_16, %c0_17, %c1_18] : memref<2x16x40xf32, #tpu.memory_space<vmem>>, vector<1x12x32xf32>
    %16 = vector.shape_cast %15 : vector<1x12x32xf32> to vector<12x32xf32>
    %c12 = arith.constant 12 : index
    %c0_19 = arith.constant 0 : index
    %17 = vector.load %arg5[%c12, %c0_19] : memref<216x160xf32, #tpu.memory_space<vmem>>, vector<12x32xf32>
    tpu.vector_store %arg5[%c12, %c0_19], %16 {strides = array<i32>} : memref<216x160xf32, #tpu.memory_space<vmem>>, vector<12x32xf32>,
    %c0_20 = arith.constant 0 : index
    %c1_21 = arith.constant 1 : index
    %c1_22 = arith.constant 1 : index
    %18 = vector.load %arg1[%c0_20, %c1_21, %c1_22] : memref<2x16x40xf32, #tpu.memory_space<vmem>>, vector<1x12x32xf32>
    %19 = vector.shape_cast %18 : vector<1x12x32xf32> to vector<12x32xf32>
    %c12_23 = arith.constant 12 : index
    %c32_24 = arith.constant 32 : index
    %20 = vector.load %arg5[%c12_23, %c32_24] : memref<216x160xf32, #tpu.memory_space<vmem>>, vector<12x32xf32>
    tpu.vector_store %arg5[%c12_23, %c32_24], %19 {strides = array<i32>} : memref<216x160xf32, #tpu.memory_space<vmem>>, vector<12x32xf32>,
    %c0_25 = arith.constant 0 : index
    %c2_26 = arith.constant 2 : index
    %c1_27 = arith.constant 1 : index
    %21 = vector.load %arg1[%c0_25, %c2_26, %c1_27] : memref<2x16x40xf32, #tpu.memory_space<vmem>>, vector<1x12x32xf32>
    %22 = vector.shape_cast %21 : vector<1x12x32xf32> to vector<12x32xf32>
    %c12_28 = arith.constant 12 : index
    %c64_29 = arith.constant 64 : index
    %23 = vector.load %arg5[%c12_28, %c64_29] : memref<216x160xf32, #tpu.memory_space<vmem>>, vector<12x32xf32>
    tpu.vector_store %arg5[%c12_28, %c64_29], %22 {strides = array<i32>} : memref<216x160xf32, #tpu.memory_space<vmem>>, vector<12x32xf32>,
    %c0_30 = arith.constant 0 : index
    %c3_31 = arith.constant 3 : index
    %c1_32 = arith.constant 1 : index
    %24 = vector.load %arg1[%c0_30, %c3_31, %c1_32] : memref<2x16x40xf32, #tpu.memory_space<vmem>>, vector<1x12x32xf32>
    %25 = vector.shape_cast %24 : vector<1x12x32xf32> to vector<12x32xf32>
    %c12_33 = arith.constant 12 : index
    %c96_34 = arith.constant 96 : index
    %26 = vector.load %arg5[%c12_33, %c96_34] : memref<216x160xf32, #tpu.memory_space<vmem>>, vector<12x32xf32>
    tpu.vector_store %arg5[%c12_33, %c96_34], %25 {strides = array<i32>} : memref<216x160xf32, #tpu.memory_space<vmem>>, vector<12x32xf32>,
    %c0_35 = arith.constant 0 : index
    %c4_36 = arith.constant 4 : index
    %c1_37 = arith.constant 1 : index
    %27 = vector.load %arg1[%c0_35, %c4_36, %c1_37] : memref<2x16x40xf32, #tpu.memory_space<vmem>>, vector<1x12x32xf32>
    %28 = vector.shape_cast %27 : vector<1x12x32xf32> to vector<12x32xf32>
    %c12_38 = arith.constant 12 : index
    %c128_39 = arith.constant 128 : index
    %29 = vector.load %arg5[%c12_38, %c128_39] : memref<216x160xf32, #tpu.memory_space<vmem>>, vector<12x32xf32>
    tpu.vector_store %arg5[%c12_38, %c128_39], %28 {strides = array<i32>} : memref<216x160xf32, #tpu.memory_space<vmem>>, vector<12x32xf32>,
    %c0_40 = arith.constant 0 : index
    %c0_41 = arith.constant 0 : index
    %c2_42 = arith.constant 2 : index
    %30 = vector.load %arg1[%c0_40, %c0_41, %c2_42] : memref<2x16x40xf32, #tpu.memory_space<vmem>>, vector<1x12x32xf32>
    %31 = vector.shape_cast %30 : vector<1x12x32xf32> to vector<12x32xf32>
    %c24 = arith.constant 24 : index
    %c0_43 = arith.constant 0 : index
    %32 = vector.load %arg5[%c24, %c0_43] : memref<216x160xf32, #tpu.memory_space<vmem>>, vector<12x32xf32>
    tpu.vector_store %arg5[%c24, %c0_43], %31 {strides = array<i32>} : memref<216x160xf32, #tpu.memory_space<vmem>>, vector<12x32xf32>,
    %c0_44 = arith.constant 0 : index
    %c1_45 = arith.constant 1 : index
    %c2_46 = arith.constant 2 : index
    %33 = vector.load %arg1[%c0_44, %c1_45, %c2_46] : memref<2x16x40xf32, #tpu.memory_space<vmem>>, vector<1x12x32xf32>
    %34 = vector.shape_cast %33 : vector<1x12x32xf32> to vector<12x32xf32>
    %c24_47 = arith.constant 24 : index
    %c32_48 = arith.constant 32 : index
    %35 = vector.load %arg5[%c24_47, %c32_48] : memref<216x160xf32, #tpu.memory_space<vmem>>, vector<12x32xf32>
    tpu.vector_store %arg5[%c24_47, %c32_48], %34 {strides = array<i32>} : memref<216x160xf32, #tpu.memory_space<vmem>>, vector<12x32xf32>,
    %c0_49 = arith.constant 0 : index
    %c2_50 = arith.constant 2 : index
    %c2_51 = arith.constant 2 : index
    %36 = vector.load %arg1[%c0_49, %c2_50, %c2_51] : memref<2x16x40xf32, #tpu.memory_space<vmem>>, vector<1x12x32xf32>
    %37 = vector.shape_cast %36 : vector<1x12x32xf32> to vector<12x32xf32>
    %c24_52 = arith.constant 24 : index
    %c64_53 = arith.constant 64 : index
    %38 = vector.load %arg5[%c24_52, %c64_53] : memref<216x160xf32, #tpu.memory_space<vmem>>, vector<12x32xf32>
    tpu.vector_store %arg5[%c24_52, %c64_53], %37 {strides = array<i32>} : memref<216x160xf32, #tpu.memory_space<vmem>>, vector<12x32xf32>,
    %c0_54 = arith.constant 0 : index
    %c3_55 = arith.constant 3 : index
    %c2_56 = arith.constant 2 : index
    %39 = vector.load %arg1[%c0_54, %c3_55, %c2_56] : memref<2x16x40xf32, #tpu.memory_space<vmem>>, vector<1x12x32xf32>
    %40 = vector.shape_cast %39 : vector<1x12x32xf32> to vector<12x32xf32>
    %c24_57 = arith.constant 24 : index
    %c96_58 = arith.constant 96 : index
    %41 = vector.load %arg5[%c24_57, %c96_58] : memref<216x160xf32, #tpu.memory_space<vmem>>, vector<12x32xf32>
    tpu.vector_store %arg5[%c24_57, %c96_58], %40 {strides = array<i32>} : memref<216x160xf32, #tpu.memory_space<vmem>>, vector<12x32xf32>,
    %c0_59 = arith.constant 0 : index
    %c4_60 = arith.constant 4 : index
    %c2_61 = arith.constant 2 : index
    %42 = vector.load %arg1[%c0_59, %c4_60, %c2_61] : memref<2x16x40xf32, #tpu.memory_space<vmem>>, vector<1x12x32xf32>
    %43 = vector.shape_cast %42 : vector<1x12x32xf32> to vector<12x32xf32>
    %c24_62 = arith.constant 24 : index
    %c128_63 = arith.constant 128 : index
    %44 = vector.load %arg5[%c24_62, %c128_63] : memref<216x160xf32, #tpu.memory_space<vmem>>, vector<12x32xf32>
    tpu.vector_store %arg5[%c24_62, %c128_63], %43 {strides = array<i32>} : memref<216x160xf32, #tpu.memory_space<vmem>>, vector<12x32xf32>,
    %c0_64 = arith.constant 0 : index
    %c0_65 = arith.constant 0 : index
    %c3_66 = arith.constant 3 : index
    %45 = vector.load %arg1[%c0_64, %c0_65, %c3_66] : memref<2x16x40xf32, #tpu.memory_space<vmem>>, vector<1x12x32xf32>
    %46 = vector.shape_cast %45 : vector<1x12x32xf32> to vector<12x32xf32>
    %c36 = arith.constant 36 : index
    %c0_67 = arith.constant 0 : index
    %47 = vector.load %arg5[%c36, %c0_67] : memref<216x160xf32, #tpu.memory_space<vmem>>, vector<12x32xf32>
    tpu.vector_store %arg5[%c36, %c0_67], %46 {strides = array<i32>} : memref<216x160xf32, #tpu.memory_space<vmem>>, vector<12x32xf32>,
    %c0_68 = arith.constant 0 : index
    %c1_69 = arith.constant 1 : index
    %c3_70 = arith.constant 3 : index
    %48 = vector.load %arg1[%c0_68, %c1_69, %c3_70] : memref<2x16x40xf32, #tpu.memory_space<vmem>>, vector<1x12x32xf32>
    %49 = vector.shape_cast %48 : vector<1x12x32xf32> to vector<12x32xf32>
    %c36_71 = arith.constant 36 : index
    %c32_72 = arith.constant 32 : index
    %50 = vector.load %arg5[%c36_71, %c32_72] : memref<216x160xf32, #tpu.memory_space<vmem>>, vector<12x32xf32>
    tpu.vector_store %arg5[%c36_71, %c32_72], %49 {strides = array<i32>} : memref<216x160xf32, #tpu.memory_space<vmem>>, vector<12x32xf32>,
    %c0_73 = arith.constant 0 : index
    %c2_74 = arith.constant 2 : index
    %c3_75 = arith.constant 3 : index
    %51 = vector.load %arg1[%c0_73, %c2_74, %c3_75] : memref<2x16x40xf32, #tpu.memory_space<vmem>>, vector<1x12x32xf32>
    %52 = vector.shape_cast %51 : vector<1x12x32xf32> to vector<12x32xf32>
    %c36_76 = arith.constant 36 : index
    %c64_77 = arith.constant 64 : index
    %53 = vector.load %arg5[%c36_76, %c64_77] : memref<216x160xf32, #tpu.memory_space<vmem>>, vector<12x32xf32>
    tpu.vector_store %arg5[%c36_76, %c64_77], %52 {strides = array<i32>} : memref<216x160xf32, #tpu.memory_space<vmem>>, vector<12x32xf32>,
    %c0_78 = arith.constant 0 : index
    %c3_79 = arith.constant 3 : index
    %c3_80 = arith.constant 3 : index
    %54 = vector.load %arg1[%c0_78, %c3_79, %c3_80] : memref<2x16x40xf32, #tpu.memory_space<vmem>>, vector<1x12x32xf32>
    %55 = vector.shape_cast %54 : vector<1x12x32xf32> to vector<12x32xf32>
    %c36_81 = arith.constant 36 : index
    %c96_82 = arith.constant 96 : index
    %56 = vector.load %arg5[%c36_81, %c96_82] : memref<216x160xf32, #tpu.memory_space<vmem>>, vector<12x32xf32>
    tpu.vector_store %arg5[%c36_81, %c96_82], %55 {strides = array<i32>} : memref<216x160xf32, #tpu.memory_space<vmem>>, vector<12x32xf32>,
    %c0_83 = arith.constant 0 : index
    %c4_84 = arith.constant 4 : index
    %c3_85 = arith.constant 3 : index
    %57 = vector.load %arg1[%c0_83, %c4_84, %c3_85] : memref<2x16x40xf32, #tpu.memory_space<vmem>>, vector<1x12x32xf32>
    %58 = vector.shape_cast %57 : vector<1x12x32xf32> to vector<12x32xf32>
    %c36_86 = arith.constant 36 : index
    %c128_87 = arith.constant 128 : index
    %59 = vector.load %arg5[%c36_86, %c128_87] : memref<216x160xf32, #tpu.memory_space<vmem>>, vector<12x32xf32>
    tpu.vector_store %arg5[%c36_86, %c128_87], %58 {strides = array<i32>} : memref<216x160xf32, #tpu.memory_space<vmem>>, vector<12x32xf32>,
    %c0_88 = arith.constant 0 : index
    %c0_89 = arith.constant 0 : index
    %c4_90 = arith.constant 4 : index
    %60 = vector.load %arg1[%c0_88, %c0_89, %c4_90] : memref<2x16x40xf32, #tpu.memory_space<vmem>>, vector<1x12x32xf32>
    %61 = vector.shape_cast %60 : vector<1x12x32xf32> to vector<12x32xf32>
    %c48 = arith.constant 48 : index
    %c0_91 = arith.constant 0 : index
    %62 = vector.load %arg5[%c48, %c0_91] : memref<216x160xf32, #tpu.memory_space<vmem>>, vector<12x32xf32>
    tpu.vector_store %arg5[%c48, %c0_91], %61 {strides = array<i32>} : memref<216x160xf32, #tpu.memory_space<vmem>>, vector<12x32xf32>,
    %c0_92 = arith.constant 0 : index
    %c1_93 = arith.constant 1 : index
    %c4_94 = arith.constant 4 : index
    %63 = vector.load %arg1[%c0_92, %c1_93, %c4_94] : memref<2x16x40xf32, #tpu.memory_space<vmem>>, vector<1x12x32xf32>
    %64 = vector.shape_cast %63 : vector<1x12x32xf32> to vector<12x32xf32>
    %c48_95 = arith.constant 48 : index
    %c32_96 = arith.constant 32 : index
    %65 = vector.load %arg5[%c48_95, %c32_96] : memref<216x160xf32, #tpu.memory_space<vmem>>, vector<12x32xf32>
    tpu.vector_store %arg5[%c48_95, %c32_96], %64 {strides = array<i32>} : memref<216x160xf32, #tpu.memory_space<vmem>>, vector<12x32xf32>,
    %c0_97 = arith.constant 0 : index
    %c2_98 = arith.constant 2 : index
    %c4_99 = arith.constant 4 : index
    %66 = vector.load %arg1[%c0_97, %c2_98, %c4_99] : memref<2x16x40xf32, #tpu.memory_space<vmem>>, vector<1x12x32xf32>
    %67 = vector.shape_cast %66 : vector<1x12x32xf32> to vector<12x32xf32>
    %c48_100 = arith.constant 48 : index
    %c64_101 = arith.constant 64 : index
    %68 = vector.load %arg5[%c48_100, %c64_101] : memref<216x160xf32, #tpu.memory_space<vmem>>, vector<12x32xf32>
    tpu.vector_store %arg5[%c48_100, %c64_101], %67 {strides = array<i32>} : memref<216x160xf32, #tpu.memory_space<vmem>>, vector<12x32xf32>,
    %c0_102 = arith.constant 0 : index
    %c3_103 = arith.constant 3 : index
    %c4_104 = arith.constant 4 : index
    %69 = vector.load %arg1[%c0_102, %c3_103, %c4_104] : memref<2x16x40xf32, #tpu.memory_space<vmem>>, vector<1x12x32xf32>
    %70 = vector.shape_cast %69 : vector<1x12x32xf32> to vector<12x32xf32>
    %c48_105 = arith.constant 48 : index
    %c96_106 = arith.constant 96 : index
    %71 = vector.load %arg5[%c48_105, %c96_106] : memref<216x160xf32, #tpu.memory_space<vmem>>, vector<12x32xf32>
    tpu.vector_store %arg5[%c48_105, %c96_106], %70 {strides = array<i32>} : memref<216x160xf32, #tpu.memory_space<vmem>>, vector<12x32xf32>,
    %c0_107 = arith.constant 0 : index
    %c4_108 = arith.constant 4 : index
    %c4_109 = arith.constant 4 : index
    %72 = vector.load %arg1[%c0_107, %c4_108, %c4_109] : memref<2x16x40xf32, #tpu.memory_space<vmem>>, vector<1x12x32xf32>
    %73 = vector.shape_cast %72 : vector<1x12x32xf32> to vector<12x32xf32>
    %c48_110 = arith.constant 48 : index
    %c128_111 = arith.constant 128 : index
    %74 = vector.load %arg5[%c48_110, %c128_111] : memref<216x160xf32, #tpu.memory_space<vmem>>, vector<12x32xf32>
    tpu.vector_store %arg5[%c48_110, %c128_111], %73 {strides = array<i32>} : memref<216x160xf32, #tpu.memory_space<vmem>>, vector<12x32xf32>,
    %c0_112 = arith.constant 0 : index
    %c0_113 = arith.constant 0 : index
    %c5 = arith.constant 5 : index
    %75 = vector.load %arg1[%c0_112, %c0_113, %c5] : memref<2x16x40xf32, #tpu.memory_space<vmem>>, vector<1x12x32xf32>
    %76 = vector.shape_cast %75 : vector<1x12x32xf32> to vector<12x32xf32>
    %c60 = arith.constant 60 : index
    %c0_114 = arith.constant 0 : index
    %77 = vector.load %arg5[%c60, %c0_114] : memref<216x160xf32, #tpu.memory_space<vmem>>, vector<12x32xf32>
    tpu.vector_store %arg5[%c60, %c0_114], %76 {strides = array<i32>} : memref<216x160xf32, #tpu.memory_space<vmem>>, vector<12x32xf32>,
    %c0_115 = arith.constant 0 : index
    %c1_116 = arith.constant 1 : index
    %c5_117 = arith.constant 5 : index
    %78 = vector.load %arg1[%c0_115, %c1_116, %c5_117] : memref<2x16x40xf32, #tpu.memory_space<vmem>>, vector<1x12x32xf32>
    %79 = vector.shape_cast %78 : vector<1x12x32xf32> to vector<12x32xf32>
    %c60_118 = arith.constant 60 : index
    %c32_119 = arith.constant 32 : index
    %80 = vector.load %arg5[%c60_118, %c32_119] : memref<216x160xf32, #tpu.memory_space<vmem>>, vector<12x32xf32>
    tpu.vector_store %arg5[%c60_118, %c32_119], %79 {strides = array<i32>} : memref<216x160xf32, #tpu.memory_space<vmem>>, vector<12x32xf32>,
    %c0_120 = arith.constant 0 : index
    %c2_121 = arith.constant 2 : index
    %c5_122 = arith.constant 5 : index
    %81 = vector.load %arg1[%c0_120, %c2_121, %c5_122] : memref<2x16x40xf32, #tpu.memory_space<vmem>>, vector<1x12x32xf32>
    %82 = vector.shape_cast %81 : vector<1x12x32xf32> to vector<12x32xf32>
    %c60_123 = arith.constant 60 : index
    %c64_124 = arith.constant 64 : index
    %83 = vector.load %arg5[%c60_123, %c64_124] : memref<216x160xf32, #tpu.memory_space<vmem>>, vector<12x32xf32>
    tpu.vector_store %arg5[%c60_123, %c64_124], %82 {strides = array<i32>} : memref<216x160xf32, #tpu.memory_space<vmem>>, vector<12x32xf32>,
    %c0_125 = arith.constant 0 : index
    %c3_126 = arith.constant 3 : index
    %c5_127 = arith.constant 5 : index
    %84 = vector.load %arg1[%c0_125, %c3_126, %c5_127] : memref<2x16x40xf32, #tpu.memory_space<vmem>>, vector<1x12x32xf32>
    %85 = vector.shape_cast %84 : vector<1x12x32xf32> to vector<12x32xf32>
    %c60_128 = arith.constant 60 : index
    %c96_129 = arith.constant 96 : index
    %86 = vector.load %arg5[%c60_128, %c96_129] : memref<216x160xf32, #tpu.memory_space<vmem>>, vector<12x32xf32>
    tpu.vector_store %arg5[%c60_128, %c96_129], %85 {strides = array<i32>} : memref<216x160xf32, #tpu.memory_space<vmem>>, vector<12x32xf32>,
    %c0_130 = arith.constant 0 : index
    %c4_131 = arith.constant 4 : index
    %c5_132 = arith.constant 5 : index
    %87 = vector.load %arg1[%c0_130, %c4_131, %c5_132] : memref<2x16x40xf32, #tpu.memory_space<vmem>>, vector<1x12x32xf32>
    %88 = vector.shape_cast %87 : vector<1x12x32xf32> to vector<12x32xf32>
    %c60_133 = arith.constant 60 : index
    %c128_134 = arith.constant 128 : index
    %89 = vector.load %arg5[%c60_133, %c128_134] : memref<216x160xf32, #tpu.memory_space<vmem>>, vector<12x32xf32>
    tpu.vector_store %arg5[%c60_133, %c128_134], %88 {strides = array<i32>} : memref<216x160xf32, #tpu.memory_space<vmem>>, vector<12x32xf32>,
    %c0_135 = arith.constant 0 : index
    %c0_136 = arith.constant 0 : index
    %c6 = arith.constant 6 : index
    %90 = vector.load %arg1[%c0_135, %c0_136, %c6] : memref<2x16x40xf32, #tpu.memory_space<vmem>>, vector<1x12x32xf32>
    %91 = vector.shape_cast %90 : vector<1x12x32xf32> to vector<12x32xf32>
    %c72 = arith.constant 72 : index
    %c0_137 = arith.constant 0 : index
    %92 = vector.load %arg5[%c72, %c0_137] : memref<216x160xf32, #tpu.memory_space<vmem>>, vector<12x32xf32>
    tpu.vector_store %arg5[%c72, %c0_137], %91 {strides = array<i32>} : memref<216x160xf32, #tpu.memory_space<vmem>>, vector<12x32xf32>,
    %c0_138 = arith.constant 0 : index
    %c1_139 = arith.constant 1 : index
    %c6_140 = arith.constant 6 : index
    %93 = vector.load %arg1[%c0_138, %c1_139, %c6_140] : memref<2x16x40xf32, #tpu.memory_space<vmem>>, vector<1x12x32xf32>
    %94 = vector.shape_cast %93 : vector<1x12x32xf32> to vector<12x32xf32>
    %c72_141 = arith.constant 72 : index
    %c32_142 = arith.constant 32 : index
    %95 = vector.load %arg5[%c72_141, %c32_142] : memref<216x160xf32, #tpu.memory_space<vmem>>, vector<12x32xf32>
    tpu.vector_store %arg5[%c72_141, %c32_142], %94 {strides = array<i32>} : memref<216x160xf32, #tpu.memory_space<vmem>>, vector<12x32xf32>,
    %c0_143 = arith.constant 0 : index
    %c2_144 = arith.constant 2 : index
    %c6_145 = arith.constant 6 : index
    %96 = vector.load %arg1[%c0_143, %c2_144, %c6_145] : memref<2x16x40xf32, #tpu.memory_space<vmem>>, vector<1x12x32xf32>
    %97 = vector.shape_cast %96 : vector<1x12x32xf32> to vector<12x32xf32>
    %c72_146 = arith.constant 72 : index
    %c64_147 = arith.constant 64 : index
    %98 = vector.load %arg5[%c72_146, %c64_147] : memref<216x160xf32, #tpu.memory_space<vmem>>, vector<12x32xf32>
    tpu.vector_store %arg5[%c72_146, %c64_147], %97 {strides = array<i32>} : memref<216x160xf32, #tpu.memory_space<vmem>>, vector<12x32xf32>,
    %c0_148 = arith.constant 0 : index
    %c3_149 = arith.constant 3 : index
    %c6_150 = arith.constant 6 : index
    %99 = vector.load %arg1[%c0_148, %c3_149, %c6_150] : memref<2x16x40xf32, #tpu.memory_space<vmem>>, vector<1x12x32xf32>
    %100 = vector.shape_cast %99 : vector<1x12x32xf32> to vector<12x32xf32>
    %c72_151 = arith.constant 72 : index
    %c96_152 = arith.constant 96 : index
    %101 = vector.load %arg5[%c72_151, %c96_152] : memref<216x160xf32, #tpu.memory_space<vmem>>, vector<12x32xf32>
    tpu.vector_store %arg5[%c72_151, %c96_152], %100 {strides = array<i32>} : memref<216x160xf32, #tpu.memory_space<vmem>>, vector<12x32xf32>,
    %c0_153 = arith.constant 0 : index
    %c4_154 = arith.constant 4 : index
    %c6_155 = arith.constant 6 : index
    %102 = vector.load %arg1[%c0_153, %c4_154, %c6_155] : memref<2x16x40xf32, #tpu.memory_space<vmem>>, vector<1x12x32xf32>
    %103 = vector.shape_cast %102 : vector<1x12x32xf32> to vector<12x32xf32>
    %c72_156 = arith.constant 72 : index
    %c128_157 = arith.constant 128 : index
    %104 = vector.load %arg5[%c72_156, %c128_157] : memref<216x160xf32, #tpu.memory_space<vmem>>, vector<12x32xf32>
    tpu.vector_store %arg5[%c72_156, %c128_157], %103 {strides = array<i32>} : memref<216x160xf32, #tpu.memory_space<vmem>>, vector<12x32xf32>,
    %c0_158 = arith.constant 0 : index
    %c0_159 = arith.constant 0 : index
    %c7 = arith.constant 7 : index
    %105 = vector.load %arg1[%c0_158, %c0_159, %c7] : memref<2x16x40xf32, #tpu.memory_space<vmem>>, vector<1x12x32xf32>
    %106 = vector.shape_cast %105 : vector<1x12x32xf32> to vector<12x32xf32>
    %c84 = arith.constant 84 : index
    %c0_160 = arith.constant 0 : index
    %107 = vector.load %arg5[%c84, %c0_160] : memref<216x160xf32, #tpu.memory_space<vmem>>, vector<12x32xf32>
    tpu.vector_store %arg5[%c84, %c0_160], %106 {strides = array<i32>} : memref<216x160xf32, #tpu.memory_space<vmem>>, vector<12x32xf32>,
    %c0_161 = arith.constant 0 : index
    %c1_162 = arith.constant 1 : index
    %c7_163 = arith.constant 7 : index
    %108 = vector.load %arg1[%c0_161, %c1_162, %c7_163] : memref<2x16x40xf32, #tpu.memory_space<vmem>>, vector<1x12x32xf32>
    %109 = vector.shape_cast %108 : vector<1x12x32xf32> to vector<12x32xf32>
    %c84_164 = arith.constant 84 : index
    %c32_165 = arith.constant 32 : index
    %110 = vector.load %arg5[%c84_164, %c32_165] : memref<216x160xf32, #tpu.memory_space<vmem>>, vector<12x32xf32>
    tpu.vector_store %arg5[%c84_164, %c32_165], %109 {strides = array<i32>} : memref<216x160xf32, #tpu.memory_space<vmem>>, vector<12x32xf32>,
    %c0_166 = arith.constant 0 : index
    %c2_167 = arith.constant 2 : index
    %c7_168 = arith.constant 7 : index
    %111 = vector.load %arg1[%c0_166, %c2_167, %c7_168] : memref<2x16x40xf32, #tpu.memory_space<vmem>>, vector<1x12x32xf32>
    %112 = vector.shape_cast %111 : vector<1x12x32xf32> to vector<12x32xf32>
    %c84_169 = arith.constant 84 : index
    %c64_170 = arith.constant 64 : index
    %113 = vector.load %arg5[%c84_169, %c64_170] : memref<216x160xf32, #tpu.memory_space<vmem>>, vector<12x32xf32>
    tpu.vector_store %arg5[%c84_169, %c64_170], %112 {strides = array<i32>} : memref<216x160xf32, #tpu.memory_space<vmem>>, vector<12x32xf32>,
    %c0_171 = arith.constant 0 : index
    %c3_172 = arith.constant 3 : index
    %c7_173 = arith.constant 7 : index
    %114 = vector.load %arg1[%c0_171, %c3_172, %c7_173] : memref<2x16x40xf32, #tpu.memory_space<vmem>>, vector<1x12x32xf32>
    %115 = vector.shape_cast %114 : vector<1x12x32xf32> to vector<12x32xf32>
    %c84_174 = arith.constant 84 : index
    %c96_175 = arith.constant 96 : index
    %116 = vector.load %arg5[%c84_174, %c96_175] : memref<216x160xf32, #tpu.memory_space<vmem>>, vector<12x32xf32>
    tpu.vector_store %arg5[%c84_174, %c96_175], %115 {strides = array<i32>} : memref<216x160xf32, #tpu.memory_space<vmem>>, vector<12x32xf32>,
    %c0_176 = arith.constant 0 : index
    %c4_177 = arith.constant 4 : index
    %c7_178 = arith.constant 7 : index
    %117 = vector.load %arg1[%c0_176, %c4_177, %c7_178] : memref<2x16x40xf32, #tpu.memory_space<vmem>>, vector<1x12x32xf32>
    %118 = vector.shape_cast %117 : vector<1x12x32xf32> to vector<12x32xf32>
    %c84_179 = arith.constant 84 : index
    %c128_180 = arith.constant 128 : index
    %119 = vector.load %arg5[%c84_179, %c128_180] : memref<216x160xf32, #tpu.memory_space<vmem>>, vector<12x32xf32>
    tpu.vector_store %arg5[%c84_179, %c128_180], %118 {strides = array<i32>} : memref<216x160xf32, #tpu.memory_space<vmem>>, vector<12x32xf32>,
    %c0_181 = arith.constant 0 : index
    %c0_182 = arith.constant 0 : index
    %c8 = arith.constant 8 : index
    %120 = vector.load %arg1[%c0_181, %c0_182, %c8] : memref<2x16x40xf32, #tpu.memory_space<vmem>>, vector<1x12x32xf32>
    %121 = vector.shape_cast %120 : vector<1x12x32xf32> to vector<12x32xf32>
    %c96_183 = arith.constant 96 : index
    %c0_184 = arith.constant 0 : index
    %122 = vector.load %arg5[%c96_183, %c0_184] : memref<216x160xf32, #tpu.memory_space<vmem>>, vector<12x32xf32>
    tpu.vector_store %arg5[%c96_183, %c0_184], %121 {strides = array<i32>} : memref<216x160xf32, #tpu.memory_space<vmem>>, vector<12x32xf32>,
    %c0_185 = arith.constant 0 : index
    %c1_186 = arith.constant 1 : index
    %c8_187 = arith.constant 8 : index
    %123 = vector.load %arg1[%c0_185, %c1_186, %c8_187] : memref<2x16x40xf32, #tpu.memory_space<vmem>>, vector<1x12x32xf32>
    %124 = vector.shape_cast %123 : vector<1x12x32xf32> to vector<12x32xf32>
    %c96_188 = arith.constant 96 : index
    %c32_189 = arith.constant 32 : index
    %125 = vector.load %arg5[%c96_188, %c32_189] : memref<216x160xf32, #tpu.memory_space<vmem>>, vector<12x32xf32>
    tpu.vector_store %arg5[%c96_188, %c32_189], %124 {strides = array<i32>} : memref<216x160xf32, #tpu.memory_space<vmem>>, vector<12x32xf32>,
    %c0_190 = arith.constant 0 : index
    %c2_191 = arith.constant 2 : index
    %c8_192 = arith.constant 8 : index
    %126 = vector.load %arg1[%c0_190, %c2_191, %c8_192] : memref<2x16x40xf32, #tpu.memory_space<vmem>>, vector<1x12x32xf32>
    %127 = vector.shape_cast %126 : vector<1x12x32xf32> to vector<12x32xf32>
    %c96_193 = arith.constant 96 : index
    %c64_194 = arith.constant 64 : index
    %128 = vector.load %arg5[%c96_193, %c64_194] : memref<216x160xf32, #tpu.memory_space<vmem>>, vector<12x32xf32>
    tpu.vector_store %arg5[%c96_193, %c64_194], %127 {strides = array<i32>} : memref<216x160xf32, #tpu.memory_space<vmem>>, vector<12x32xf32>,
    %c0_195 = arith.constant 0 : index
    %c3_196 = arith.constant 3 : index
    %c8_197 = arith.constant 8 : index
    %129 = vector.load %arg1[%c0_195, %c3_196, %c8_197] : memref<2x16x40xf32, #tpu.memory_space<vmem>>, vector<1x12x32xf32>
    %130 = vector.shape_cast %129 : vector<1x12x32xf32> to vector<12x32xf32>
    %c96_198 = arith.constant 96 : index
    %c96_199 = arith.constant 96 : index
    %131 = vector.load %arg5[%c96_198, %c96_199] : memref<216x160xf32, #tpu.memory_space<vmem>>, vector<12x32xf32>
    tpu.vector_store %arg5[%c96_198, %c96_199], %130 {strides = array<i32>} : memref<216x160xf32, #tpu.memory_space<vmem>>, vector<12x32xf32>,
    %c0_200 = arith.constant 0 : index
    %c4_201 = arith.constant 4 : index
    %c8_202 = arith.constant 8 : index
    %132 = vector.load %arg1[%c0_200, %c4_201, %c8_202] : memref<2x16x40xf32, #tpu.memory_space<vmem>>, vector<1x12x32xf32>
    %133 = vector.shape_cast %132 : vector<1x12x32xf32> to vector<12x32xf32>
    %c96_203 = arith.constant 96 : index
    %c128_204 = arith.constant 128 : index
    %134 = vector.load %arg5[%c96_203, %c128_204] : memref<216x160xf32, #tpu.memory_space<vmem>>, vector<12x32xf32>
    tpu.vector_store %arg5[%c96_203, %c128_204], %133 {strides = array<i32>} : memref<216x160xf32, #tpu.memory_space<vmem>>, vector<12x32xf32>,
    %c1_205 = arith.constant 1 : index
    %c0_206 = arith.constant 0 : index
    %c0_207 = arith.constant 0 : index
    %135 = vector.load %arg1[%c1_205, %c0_206, %c0_207] : memref<2x16x40xf32, #tpu.memory_space<vmem>>, vector<1x12x32xf32>
    %136 = vector.shape_cast %135 : vector<1x12x32xf32> to vector<12x32xf32>
    %c108 = arith.constant 108 : index
    %c0_208 = arith.constant 0 : index
    %137 = vector.load %arg5[%c108, %c0_208] : memref<216x160xf32, #tpu.memory_space<vmem>>, vector<12x32xf32>
    tpu.vector_store %arg5[%c108, %c0_208], %136 {strides = array<i32>} : memref<216x160xf32, #tpu.memory_space<vmem>>, vector<12x32xf32>,
    %c1_209 = arith.constant 1 : index
    %c1_210 = arith.constant 1 : index
    %c0_211 = arith.constant 0 : index
    %138 = vector.load %arg1[%c1_209, %c1_210, %c0_211] : memref<2x16x40xf32, #tpu.memory_space<vmem>>, vector<1x12x32xf32>
    %139 = vector.shape_cast %138 : vector<1x12x32xf32> to vector<12x32xf32>
    %c108_212 = arith.constant 108 : index
    %c32_213 = arith.constant 32 : index
    %140 = vector.load %arg5[%c108_212, %c32_213] : memref<216x160xf32, #tpu.memory_space<vmem>>, vector<12x32xf32>
    tpu.vector_store %arg5[%c108_212, %c32_213], %139 {strides = array<i32>} : memref<216x160xf32, #tpu.memory_space<vmem>>, vector<12x32xf32>,
    %c1_214 = arith.constant 1 : index
    %c2_215 = arith.constant 2 : index
    %c0_216 = arith.constant 0 : index
    %141 = vector.load %arg1[%c1_214, %c2_215, %c0_216] : memref<2x16x40xf32, #tpu.memory_space<vmem>>, vector<1x12x32xf32>
    %142 = vector.shape_cast %141 : vector<1x12x32xf32> to vector<12x32xf32>
    %c108_217 = arith.constant 108 : index
    %c64_218 = arith.constant 64 : index
    %143 = vector.load %arg5[%c108_217, %c64_218] : memref<216x160xf32, #tpu.memory_space<vmem>>, vector<12x32xf32>
    tpu.vector_store %arg5[%c108_217, %c64_218], %142 {strides = array<i32>} : memref<216x160xf32, #tpu.memory_space<vmem>>, vector<12x32xf32>,
    %c1_219 = arith.constant 1 : index
    %c3_220 = arith.constant 3 : index
    %c0_221 = arith.constant 0 : index
    %144 = vector.load %arg1[%c1_219, %c3_220, %c0_221] : memref<2x16x40xf32, #tpu.memory_space<vmem>>, vector<1x12x32xf32>
    %145 = vector.shape_cast %144 : vector<1x12x32xf32> to vector<12x32xf32>
    %c108_222 = arith.constant 108 : index
    %c96_223 = arith.constant 96 : index
    %146 = vector.load %arg5[%c108_222, %c96_223] : memref<216x160xf32, #tpu.memory_space<vmem>>, vector<12x32xf32>
    tpu.vector_store %arg5[%c108_222, %c96_223], %145 {strides = array<i32>} : memref<216x160xf32, #tpu.memory_space<vmem>>, vector<12x32xf32>,
    %c1_224 = arith.constant 1 : index
    %c4_225 = arith.constant 4 : index
    %c0_226 = arith.constant 0 : index
    %147 = vector.load %arg1[%c1_224, %c4_225, %c0_226] : memref<2x16x40xf32, #tpu.memory_space<vmem>>, vector<1x12x32xf32>
    %148 = vector.shape_cast %147 : vector<1x12x32xf32> to vector<12x32xf32>
    %c108_227 = arith.constant 108 : index
    %c128_228 = arith.constant 128 : index
    %149 = vector.load %arg5[%c108_227, %c128_228] : memref<216x160xf32, #tpu.memory_space<vmem>>, vector<12x32xf32>
    tpu.vector_store %arg5[%c108_227, %c128_228], %148 {strides = array<i32>} : memref<216x160xf32, #tpu.memory_space<vmem>>, vector<12x32xf32>,
    %c1_229 = arith.constant 1 : index
    %c0_230 = arith.constant 0 : index
    %c1_231 = arith.constant 1 : index
    %150 = vector.load %arg1[%c1_229, %c0_230, %c1_231] : memref<2x16x40xf32, #tpu.memory_space<vmem>>, vector<1x12x32xf32>
    %151 = vector.shape_cast %150 : vector<1x12x32xf32> to vector<12x32xf32>
    %c120 = arith.constant 120 : index
    %c0_232 = arith.constant 0 : index
    %152 = vector.load %arg5[%c120, %c0_232] : memref<216x160xf32, #tpu.memory_space<vmem>>, vector<12x32xf32>
    tpu.vector_store %arg5[%c120, %c0_232], %151 {strides = array<i32>} : memref<216x160xf32, #tpu.memory_space<vmem>>, vector<12x32xf32>,
    %c1_233 = arith.constant 1 : index
    %c1_234 = arith.constant 1 : index
    %c1_235 = arith.constant 1 : index
    %153 = vector.load %arg1[%c1_233, %c1_234, %c1_235] : memref<2x16x40xf32, #tpu.memory_space<vmem>>, vector<1x12x32xf32>
    %154 = vector.shape_cast %153 : vector<1x12x32xf32> to vector<12x32xf32>
    %c120_236 = arith.constant 120 : index
    %c32_237 = arith.constant 32 : index
    %155 = vector.load %arg5[%c120_236, %c32_237] : memref<216x160xf32, #tpu.memory_space<vmem>>, vector<12x32xf32>
    tpu.vector_store %arg5[%c120_236, %c32_237], %154 {strides = array<i32>} : memref<216x160xf32, #tpu.memory_space<vmem>>, vector<12x32xf32>,
    %c1_238 = arith.constant 1 : index
    %c2_239 = arith.constant 2 : index
    %c1_240 = arith.constant 1 : index
    %156 = vector.load %arg1[%c1_238, %c2_239, %c1_240] : memref<2x16x40xf32, #tpu.memory_space<vmem>>, vector<1x12x32xf32>
    %157 = vector.shape_cast %156 : vector<1x12x32xf32> to vector<12x32xf32>
    %c120_241 = arith.constant 120 : index
    %c64_242 = arith.constant 64 : index
    %158 = vector.load %arg5[%c120_241, %c64_242] : memref<216x160xf32, #tpu.memory_space<vmem>>, vector<12x32xf32>
    tpu.vector_store %arg5[%c120_241, %c64_242], %157 {strides = array<i32>} : memref<216x160xf32, #tpu.memory_space<vmem>>, vector<12x32xf32>,
    %c1_243 = arith.constant 1 : index
    %c3_244 = arith.constant 3 : index
    %c1_245 = arith.constant 1 : index
    %159 = vector.load %arg1[%c1_243, %c3_244, %c1_245] : memref<2x16x40xf32, #tpu.memory_space<vmem>>, vector<1x12x32xf32>
    %160 = vector.shape_cast %159 : vector<1x12x32xf32> to vector<12x32xf32>
    %c120_246 = arith.constant 120 : index
    %c96_247 = arith.constant 96 : index
    %161 = vector.load %arg5[%c120_246, %c96_247] : memref<216x160xf32, #tpu.memory_space<vmem>>, vector<12x32xf32>
    tpu.vector_store %arg5[%c120_246, %c96_247], %160 {strides = array<i32>} : memref<216x160xf32, #tpu.memory_space<vmem>>, vector<12x32xf32>,
    %c1_248 = arith.constant 1 : index
    %c4_249 = arith.constant 4 : index
    %c1_250 = arith.constant 1 : index
    %162 = vector.load %arg1[%c1_248, %c4_249, %c1_250] : memref<2x16x40xf32, #tpu.memory_space<vmem>>, vector<1x12x32xf32>
    %163 = vector.shape_cast %162 : vector<1x12x32xf32> to vector<12x32xf32>
    %c120_251 = arith.constant 120 : index
    %c128_252 = arith.constant 128 : index
    %164 = vector.load %arg5[%c120_251, %c128_252] : memref<216x160xf32, #tpu.memory_space<vmem>>, vector<12x32xf32>
    tpu.vector_store %arg5[%c120_251, %c128_252], %163 {strides = array<i32>} : memref<216x160xf32, #tpu.memory_space<vmem>>, vector<12x32xf32>,
    %c1_253 = arith.constant 1 : index
    %c0_254 = arith.constant 0 : index
    %c2_255 = arith.constant 2 : index
    %165 = vector.load %arg1[%c1_253, %c0_254, %c2_255] : memref<2x16x40xf32, #tpu.memory_space<vmem>>, vector<1x12x32xf32>
    %166 = vector.shape_cast %165 : vector<1x12x32xf32> to vector<12x32xf32>
    %c132 = arith.constant 132 : index
    %c0_256 = arith.constant 0 : index
    %167 = vector.load %arg5[%c132, %c0_256] : memref<216x160xf32, #tpu.memory_space<vmem>>, vector<12x32xf32>
    tpu.vector_store %arg5[%c132, %c0_256], %166 {strides = array<i32>} : memref<216x160xf32, #tpu.memory_space<vmem>>, vector<12x32xf32>,
    %c1_257 = arith.constant 1 : index
    %c1_258 = arith.constant 1 : index
    %c2_259 = arith.constant 2 : index
    %168 = vector.load %arg1[%c1_257, %c1_258, %c2_259] : memref<2x16x40xf32, #tpu.memory_space<vmem>>, vector<1x12x32xf32>
    %169 = vector.shape_cast %168 : vector<1x12x32xf32> to vector<12x32xf32>
    %c132_260 = arith.constant 132 : index
    %c32_261 = arith.constant 32 : index
    %170 = vector.load %arg5[%c132_260, %c32_261] : memref<216x160xf32, #tpu.memory_space<vmem>>, vector<12x32xf32>
    tpu.vector_store %arg5[%c132_260, %c32_261], %169 {strides = array<i32>} : memref<216x160xf32, #tpu.memory_space<vmem>>, vector<12x32xf32>,
    %c1_262 = arith.constant 1 : index
    %c2_263 = arith.constant 2 : index
    %c2_264 = arith.constant 2 : index
    %171 = vector.load %arg1[%c1_262, %c2_263, %c2_264] : memref<2x16x40xf32, #tpu.memory_space<vmem>>, vector<1x12x32xf32>
    %172 = vector.shape_cast %171 : vector<1x12x32xf32> to vector<12x32xf32>
    %c132_265 = arith.constant 132 : index
    %c64_266 = arith.constant 64 : index
    %173 = vector.load %arg5[%c132_265, %c64_266] : memref<216x160xf32, #tpu.memory_space<vmem>>, vector<12x32xf32>
    tpu.vector_store %arg5[%c132_265, %c64_266], %172 {strides = array<i32>} : memref<216x160xf32, #tpu.memory_space<vmem>>, vector<12x32xf32>,
    %c1_267 = arith.constant 1 : index
    %c3_268 = arith.constant 3 : index
    %c2_269 = arith.constant 2 : index
    %174 = vector.load %arg1[%c1_267, %c3_268, %c2_269] : memref<2x16x40xf32, #tpu.memory_space<vmem>>, vector<1x12x32xf32>
    %175 = vector.shape_cast %174 : vector<1x12x32xf32> to vector<12x32xf32>
    %c132_270 = arith.constant 132 : index
    %c96_271 = arith.constant 96 : index
    %176 = vector.load %arg5[%c132_270, %c96_271] : memref<216x160xf32, #tpu.memory_space<vmem>>, vector<12x32xf32>
    tpu.vector_store %arg5[%c132_270, %c96_271], %175 {strides = array<i32>} : memref<216x160xf32, #tpu.memory_space<vmem>>, vector<12x32xf32>,
    %c1_272 = arith.constant 1 : index
    %c4_273 = arith.constant 4 : index
    %c2_274 = arith.constant 2 : index
    %177 = vector.load %arg1[%c1_272, %c4_273, %c2_274] : memref<2x16x40xf32, #tpu.memory_space<vmem>>, vector<1x12x32xf32>
    %178 = vector.shape_cast %177 : vector<1x12x32xf32> to vector<12x32xf32>
    %c132_275 = arith.constant 132 : index
    %c128_276 = arith.constant 128 : index
    %179 = vector.load %arg5[%c132_275, %c128_276] : memref<216x160xf32, #tpu.memory_space<vmem>>, vector<12x32xf32>
    tpu.vector_store %arg5[%c132_275, %c128_276], %178 {strides = array<i32>} : memref<216x160xf32, #tpu.memory_space<vmem>>, vector<12x32xf32>,
    %c1_277 = arith.constant 1 : index
    %c0_278 = arith.constant 0 : index
    %c3_279 = arith.constant 3 : index
    %180 = vector.load %arg1[%c1_277, %c0_278, %c3_279] : memref<2x16x40xf32, #tpu.memory_space<vmem>>, vector<1x12x32xf32>
    %181 = vector.shape_cast %180 : vector<1x12x32xf32> to vector<12x32xf32>
    %c144 = arith.constant 144 : index
    %c0_280 = arith.constant 0 : index
    %182 = vector.load %arg5[%c144, %c0_280] : memref<216x160xf32, #tpu.memory_space<vmem>>, vector<12x32xf32>
    tpu.vector_store %arg5[%c144, %c0_280], %181 {strides = array<i32>} : memref<216x160xf32, #tpu.memory_space<vmem>>, vector<12x32xf32>,
    %c1_281 = arith.constant 1 : index
    %c1_282 = arith.constant 1 : index
    %c3_283 = arith.constant 3 : index
    %183 = vector.load %arg1[%c1_281, %c1_282, %c3_283] : memref<2x16x40xf32, #tpu.memory_space<vmem>>, vector<1x12x32xf32>
    %184 = vector.shape_cast %183 : vector<1x12x32xf32> to vector<12x32xf32>
    %c144_284 = arith.constant 144 : index
    %c32_285 = arith.constant 32 : index
    %185 = vector.load %arg5[%c144_284, %c32_285] : memref<216x160xf32, #tpu.memory_space<vmem>>, vector<12x32xf32>
    tpu.vector_store %arg5[%c144_284, %c32_285], %184 {strides = array<i32>} : memref<216x160xf32, #tpu.memory_space<vmem>>, vector<12x32xf32>,
    %c1_286 = arith.constant 1 : index
    %c2_287 = arith.constant 2 : index
    %c3_288 = arith.constant 3 : index
    %186 = vector.load %arg1[%c1_286, %c2_287, %c3_288] : memref<2x16x40xf32, #tpu.memory_space<vmem>>, vector<1x12x32xf32>
    %187 = vector.shape_cast %186 : vector<1x12x32xf32> to vector<12x32xf32>
    %c144_289 = arith.constant 144 : index
    %c64_290 = arith.constant 64 : index
    %188 = vector.load %arg5[%c144_289, %c64_290] : memref<216x160xf32, #tpu.memory_space<vmem>>, vector<12x32xf32>
    tpu.vector_store %arg5[%c144_289, %c64_290], %187 {strides = array<i32>} : memref<216x160xf32, #tpu.memory_space<vmem>>, vector<12x32xf32>,
    %c1_291 = arith.constant 1 : index
    %c3_292 = arith.constant 3 : index
    %c3_293 = arith.constant 3 : index
    %189 = vector.load %arg1[%c1_291, %c3_292, %c3_293] : memref<2x16x40xf32, #tpu.memory_space<vmem>>, vector<1x12x32xf32>
    %190 = vector.shape_cast %189 : vector<1x12x32xf32> to vector<12x32xf32>
    %c144_294 = arith.constant 144 : index
    %c96_295 = arith.constant 96 : index
    %191 = vector.load %arg5[%c144_294, %c96_295] : memref<216x160xf32, #tpu.memory_space<vmem>>, vector<12x32xf32>
    tpu.vector_store %arg5[%c144_294, %c96_295], %190 {strides = array<i32>} : memref<216x160xf32, #tpu.memory_space<vmem>>, vector<12x32xf32>,
    %c1_296 = arith.constant 1 : index
    %c4_297 = arith.constant 4 : index
    %c3_298 = arith.constant 3 : index
    %192 = vector.load %arg1[%c1_296, %c4_297, %c3_298] : memref<2x16x40xf32, #tpu.memory_space<vmem>>, vector<1x12x32xf32>
    %193 = vector.shape_cast %192 : vector<1x12x32xf32> to vector<12x32xf32>
    %c144_299 = arith.constant 144 : index
    %c128_300 = arith.constant 128 : index
    %194 = vector.load %arg5[%c144_299, %c128_300] : memref<216x160xf32, #tpu.memory_space<vmem>>, vector<12x32xf32>
    tpu.vector_store %arg5[%c144_299, %c128_300], %193 {strides = array<i32>} : memref<216x160xf32, #tpu.memory_space<vmem>>, vector<12x32xf32>,
    %c1_301 = arith.constant 1 : index
    %c0_302 = arith.constant 0 : index
    %c4_303 = arith.constant 4 : index
    %195 = vector.load %arg1[%c1_301, %c0_302, %c4_303] : memref<2x16x40xf32, #tpu.memory_space<vmem>>, vector<1x12x32xf32>
    %196 = vector.shape_cast %195 : vector<1x12x32xf32> to vector<12x32xf32>
    %c156 = arith.constant 156 : index
    %c0_304 = arith.constant 0 : index
    %197 = vector.load %arg5[%c156, %c0_304] : memref<216x160xf32, #tpu.memory_space<vmem>>, vector<12x32xf32>
    tpu.vector_store %arg5[%c156, %c0_304], %196 {strides = array<i32>} : memref<216x160xf32, #tpu.memory_space<vmem>>, vector<12x32xf32>,
    %c1_305 = arith.constant 1 : index
    %c1_306 = arith.constant 1 : index
    %c4_307 = arith.constant 4 : index
    %198 = vector.load %arg1[%c1_305, %c1_306, %c4_307] : memref<2x16x40xf32, #tpu.memory_space<vmem>>, vector<1x12x32xf32>
    %199 = vector.shape_cast %198 : vector<1x12x32xf32> to vector<12x32xf32>
    %c156_308 = arith.constant 156 : index
    %c32_309 = arith.constant 32 : index
    %200 = vector.load %arg5[%c156_308, %c32_309] : memref<216x160xf32, #tpu.memory_space<vmem>>, vector<12x32xf32>
    tpu.vector_store %arg5[%c156_308, %c32_309], %199 {strides = array<i32>} : memref<216x160xf32, #tpu.memory_space<vmem>>, vector<12x32xf32>,
    %c1_310 = arith.constant 1 : index
    %c2_311 = arith.constant 2 : index
    %c4_312 = arith.constant 4 : index
    %201 = vector.load %arg1[%c1_310, %c2_311, %c4_312] : memref<2x16x40xf32, #tpu.memory_space<vmem>>, vector<1x12x32xf32>
    %202 = vector.shape_cast %201 : vector<1x12x32xf32> to vector<12x32xf32>
    %c156_313 = arith.constant 156 : index
    %c64_314 = arith.constant 64 : index
    %203 = vector.load %arg5[%c156_313, %c64_314] : memref<216x160xf32, #tpu.memory_space<vmem>>, vector<12x32xf32>
    tpu.vector_store %arg5[%c156_313, %c64_314], %202 {strides = array<i32>} : memref<216x160xf32, #tpu.memory_space<vmem>>, vector<12x32xf32>,
    %c1_315 = arith.constant 1 : index
    %c3_316 = arith.constant 3 : index
    %c4_317 = arith.constant 4 : index
    %204 = vector.load %arg1[%c1_315, %c3_316, %c4_317] : memref<2x16x40xf32, #tpu.memory_space<vmem>>, vector<1x12x32xf32>
    %205 = vector.shape_cast %204 : vector<1x12x32xf32> to vector<12x32xf32>
    %c156_318 = arith.constant 156 : index
    %c96_319 = arith.constant 96 : index
    %206 = vector.load %arg5[%c156_318, %c96_319] : memref<216x160xf32, #tpu.memory_space<vmem>>, vector<12x32xf32>
    tpu.vector_store %arg5[%c156_318, %c96_319], %205 {strides = array<i32>} : memref<216x160xf32, #tpu.memory_space<vmem>>, vector<12x32xf32>,
    %c1_320 = arith.constant 1 : index
    %c4_321 = arith.constant 4 : index
    %c4_322 = arith.constant 4 : index
    %207 = vector.load %arg1[%c1_320, %c4_321, %c4_322] : memref<2x16x40xf32, #tpu.memory_space<vmem>>, vector<1x12x32xf32>
    %208 = vector.shape_cast %207 : vector<1x12x32xf32> to vector<12x32xf32>
    %c156_323 = arith.constant 156 : index
    %c128_324 = arith.constant 128 : index
    %209 = vector.load %arg5[%c156_323, %c128_324] : memref<216x160xf32, #tpu.memory_space<vmem>>, vector<12x32xf32>
    tpu.vector_store %arg5[%c156_323, %c128_324], %208 {strides = array<i32>} : memref<216x160xf32, #tpu.memory_space<vmem>>, vector<12x32xf32>,
    %c1_325 = arith.constant 1 : index
    %c0_326 = arith.constant 0 : index
    %c5_327 = arith.constant 5 : index
    %210 = vector.load %arg1[%c1_325, %c0_326, %c5_327] : memref<2x16x40xf32, #tpu.memory_space<vmem>>, vector<1x12x32xf32>
    %211 = vector.shape_cast %210 : vector<1x12x32xf32> to vector<12x32xf32>
    %c168 = arith.constant 168 : index
    %c0_328 = arith.constant 0 : index
    %212 = vector.load %arg5[%c168, %c0_328] : memref<216x160xf32, #tpu.memory_space<vmem>>, vector<12x32xf32>
    tpu.vector_store %arg5[%c168, %c0_328], %211 {strides = array<i32>} : memref<216x160xf32, #tpu.memory_space<vmem>>, vector<12x32xf32>,
    %c1_329 = arith.constant 1 : index
    %c1_330 = arith.constant 1 : index
    %c5_331 = arith.constant 5 : index
    %213 = vector.load %arg1[%c1_329, %c1_330, %c5_331] : memref<2x16x40xf32, #tpu.memory_space<vmem>>, vector<1x12x32xf32>
    %214 = vector.shape_cast %213 : vector<1x12x32xf32> to vector<12x32xf32>
    %c168_332 = arith.constant 168 : index
    %c32_333 = arith.constant 32 : index
    %215 = vector.load %arg5[%c168_332, %c32_333] : memref<216x160xf32, #tpu.memory_space<vmem>>, vector<12x32xf32>
    tpu.vector_store %arg5[%c168_332, %c32_333], %214 {strides = array<i32>} : memref<216x160xf32, #tpu.memory_space<vmem>>, vector<12x32xf32>,
    %c1_334 = arith.constant 1 : index
    %c2_335 = arith.constant 2 : index
    %c5_336 = arith.constant 5 : index
    %216 = vector.load %arg1[%c1_334, %c2_335, %c5_336] : memref<2x16x40xf32, #tpu.memory_space<vmem>>, vector<1x12x32xf32>
    %217 = vector.shape_cast %216 : vector<1x12x32xf32> to vector<12x32xf32>
    %c168_337 = arith.constant 168 : index
    %c64_338 = arith.constant 64 : index
    %218 = vector.load %arg5[%c168_337, %c64_338] : memref<216x160xf32, #tpu.memory_space<vmem>>, vector<12x32xf32>
    tpu.vector_store %arg5[%c168_337, %c64_338], %217 {strides = array<i32>} : memref<216x160xf32, #tpu.memory_space<vmem>>, vector<12x32xf32>,
    %c1_339 = arith.constant 1 : index
    %c3_340 = arith.constant 3 : index
    %c5_341 = arith.constant 5 : index
    %219 = vector.load %arg1[%c1_339, %c3_340, %c5_341] : memref<2x16x40xf32, #tpu.memory_space<vmem>>, vector<1x12x32xf32>
    %220 = vector.shape_cast %219 : vector<1x12x32xf32> to vector<12x32xf32>
    %c168_342 = arith.constant 168 : index
    %c96_343 = arith.constant 96 : index
    %221 = vector.load %arg5[%c168_342, %c96_343] : memref<216x160xf32, #tpu.memory_space<vmem>>, vector<12x32xf32>
    tpu.vector_store %arg5[%c168_342, %c96_343], %220 {strides = array<i32>} : memref<216x160xf32, #tpu.memory_space<vmem>>, vector<12x32xf32>,
    %c1_344 = arith.constant 1 : index
    %c4_345 = arith.constant 4 : index
    %c5_346 = arith.constant 5 : index
    %222 = vector.load %arg1[%c1_344, %c4_345, %c5_346] : memref<2x16x40xf32, #tpu.memory_space<vmem>>, vector<1x12x32xf32>
    %223 = vector.shape_cast %222 : vector<1x12x32xf32> to vector<12x32xf32>
    %c168_347 = arith.constant 168 : index
    %c128_348 = arith.constant 128 : index
    %224 = vector.load %arg5[%c168_347, %c128_348] : memref<216x160xf32, #tpu.memory_space<vmem>>, vector<12x32xf32>
    tpu.vector_store %arg5[%c168_347, %c128_348], %223 {strides = array<i32>} : memref<216x160xf32, #tpu.memory_space<vmem>>, vector<12x32xf32>,
    %c1_349 = arith.constant 1 : index
    %c0_350 = arith.constant 0 : index
    %c6_351 = arith.constant 6 : index
    %225 = vector.load %arg1[%c1_349, %c0_350, %c6_351] : memref<2x16x40xf32, #tpu.memory_space<vmem>>, vector<1x12x32xf32>
    %226 = vector.shape_cast %225 : vector<1x12x32xf32> to vector<12x32xf32>
    %c180 = arith.constant 180 : index
    %c0_352 = arith.constant 0 : index
    %227 = vector.load %arg5[%c180, %c0_352] : memref<216x160xf32, #tpu.memory_space<vmem>>, vector<12x32xf32>
    tpu.vector_store %arg5[%c180, %c0_352], %226 {strides = array<i32>} : memref<216x160xf32, #tpu.memory_space<vmem>>, vector<12x32xf32>,
    %c1_353 = arith.constant 1 : index
    %c1_354 = arith.constant 1 : index
    %c6_355 = arith.constant 6 : index
    %228 = vector.load %arg1[%c1_353, %c1_354, %c6_355] : memref<2x16x40xf32, #tpu.memory_space<vmem>>, vector<1x12x32xf32>
    %229 = vector.shape_cast %228 : vector<1x12x32xf32> to vector<12x32xf32>
    %c180_356 = arith.constant 180 : index
    %c32_357 = arith.constant 32 : index
    %230 = vector.load %arg5[%c180_356, %c32_357] : memref<216x160xf32, #tpu.memory_space<vmem>>, vector<12x32xf32>
    tpu.vector_store %arg5[%c180_356, %c32_357], %229 {strides = array<i32>} : memref<216x160xf32, #tpu.memory_space<vmem>>, vector<12x32xf32>,
    %c1_358 = arith.constant 1 : index
    %c2_359 = arith.constant 2 : index
    %c6_360 = arith.constant 6 : index
    %231 = vector.load %arg1[%c1_358, %c2_359, %c6_360] : memref<2x16x40xf32, #tpu.memory_space<vmem>>, vector<1x12x32xf32>
    %232 = vector.shape_cast %231 : vector<1x12x32xf32> to vector<12x32xf32>
    %c180_361 = arith.constant 180 : index
    %c64_362 = arith.constant 64 : index
    %233 = vector.load %arg5[%c180_361, %c64_362] : memref<216x160xf32, #tpu.memory_space<vmem>>, vector<12x32xf32>
    tpu.vector_store %arg5[%c180_361, %c64_362], %232 {strides = array<i32>} : memref<216x160xf32, #tpu.memory_space<vmem>>, vector<12x32xf32>,
    %c1_363 = arith.constant 1 : index
    %c3_364 = arith.constant 3 : index
    %c6_365 = arith.constant 6 : index
    %234 = vector.load %arg1[%c1_363, %c3_364, %c6_365] : memref<2x16x40xf32, #tpu.memory_space<vmem>>, vector<1x12x32xf32>
    %235 = vector.shape_cast %234 : vector<1x12x32xf32> to vector<12x32xf32>
    %c180_366 = arith.constant 180 : index
    %c96_367 = arith.constant 96 : index
    %236 = vector.load %arg5[%c180_366, %c96_367] : memref<216x160xf32, #tpu.memory_space<vmem>>, vector<12x32xf32>
    tpu.vector_store %arg5[%c180_366, %c96_367], %235 {strides = array<i32>} : memref<216x160xf32, #tpu.memory_space<vmem>>, vector<12x32xf32>,
    %c1_368 = arith.constant 1 : index
    %c4_369 = arith.constant 4 : index
    %c6_370 = arith.constant 6 : index
    %237 = vector.load %arg1[%c1_368, %c4_369, %c6_370] : memref<2x16x40xf32, #tpu.memory_space<vmem>>, vector<1x12x32xf32>
    %238 = vector.shape_cast %237 : vector<1x12x32xf32> to vector<12x32xf32>
    %c180_371 = arith.constant 180 : index
    %c128_372 = arith.constant 128 : index
    %239 = vector.load %arg5[%c180_371, %c128_372] : memref<216x160xf32, #tpu.memory_space<vmem>>, vector<12x32xf32>
    tpu.vector_store %arg5[%c180_371, %c128_372], %238 {strides = array<i32>} : memref<216x160xf32, #tpu.memory_space<vmem>>, vector<12x32xf32>,
    %c1_373 = arith.constant 1 : index
    %c0_374 = arith.constant 0 : index
    %c7_375 = arith.constant 7 : index
    %240 = vector.load %arg1[%c1_373, %c0_374, %c7_375] : memref<2x16x40xf32, #tpu.memory_space<vmem>>, vector<1x12x32xf32>
    %241 = vector.shape_cast %240 : vector<1x12x32xf32> to vector<12x32xf32>
    %c192 = arith.constant 192 : index
    %c0_376 = arith.constant 0 : index
    %242 = vector.load %arg5[%c192, %c0_376] : memref<216x160xf32, #tpu.memory_space<vmem>>, vector<12x32xf32>
    tpu.vector_store %arg5[%c192, %c0_376], %241 {strides = array<i32>} : memref<216x160xf32, #tpu.memory_space<vmem>>, vector<12x32xf32>,
    %c1_377 = arith.constant 1 : index
    %c1_378 = arith.constant 1 : index
    %c7_379 = arith.constant 7 : index
    %243 = vector.load %arg1[%c1_377, %c1_378, %c7_379] : memref<2x16x40xf32, #tpu.memory_space<vmem>>, vector<1x12x32xf32>
    %244 = vector.shape_cast %243 : vector<1x12x32xf32> to vector<12x32xf32>
    %c192_380 = arith.constant 192 : index
    %c32_381 = arith.constant 32 : index
    %245 = vector.load %arg5[%c192_380, %c32_381] : memref<216x160xf32, #tpu.memory_space<vmem>>, vector<12x32xf32>
    tpu.vector_store %arg5[%c192_380, %c32_381], %244 {strides = array<i32>} : memref<216x160xf32, #tpu.memory_space<vmem>>, vector<12x32xf32>,
    %c1_382 = arith.constant 1 : index
    %c2_383 = arith.constant 2 : index
    %c7_384 = arith.constant 7 : index
    %246 = vector.load %arg1[%c1_382, %c2_383, %c7_384] : memref<2x16x40xf32, #tpu.memory_space<vmem>>, vector<1x12x32xf32>
    %247 = vector.shape_cast %246 : vector<1x12x32xf32> to vector<12x32xf32>
    %c192_385 = arith.constant 192 : index
    %c64_386 = arith.constant 64 : index
    %248 = vector.load %arg5[%c192_385, %c64_386] : memref<216x160xf32, #tpu.memory_space<vmem>>, vector<12x32xf32>
    tpu.vector_store %arg5[%c192_385, %c64_386], %247 {strides = array<i32>} : memref<216x160xf32, #tpu.memory_space<vmem>>, vector<12x32xf32>,
    %c1_387 = arith.constant 1 : index
    %c3_388 = arith.constant 3 : index
    %c7_389 = arith.constant 7 : index
    %249 = vector.load %arg1[%c1_387, %c3_388, %c7_389] : memref<2x16x40xf32, #tpu.memory_space<vmem>>, vector<1x12x32xf32>
    %250 = vector.shape_cast %249 : vector<1x12x32xf32> to vector<12x32xf32>
    %c192_390 = arith.constant 192 : index
    %c96_391 = arith.constant 96 : index
    %251 = vector.load %arg5[%c192_390, %c96_391] : memref<216x160xf32, #tpu.memory_space<vmem>>, vector<12x32xf32>
    tpu.vector_store %arg5[%c192_390, %c96_391], %250 {strides = array<i32>} : memref<216x160xf32, #tpu.memory_space<vmem>>, vector<12x32xf32>,
    %c1_392 = arith.constant 1 : index
    %c4_393 = arith.constant 4 : index
    %c7_394 = arith.constant 7 : index
    %252 = vector.load %arg1[%c1_392, %c4_393, %c7_394] : memref<2x16x40xf32, #tpu.memory_space<vmem>>, vector<1x12x32xf32>
    %253 = vector.shape_cast %252 : vector<1x12x32xf32> to vector<12x32xf32>
    %c192_395 = arith.constant 192 : index
    %c128_396 = arith.constant 128 : index
    %254 = vector.load %arg5[%c192_395, %c128_396] : memref<216x160xf32, #tpu.memory_space<vmem>>, vector<12x32xf32>
    tpu.vector_store %arg5[%c192_395, %c128_396], %253 {strides = array<i32>} : memref<216x160xf32, #tpu.memory_space<vmem>>, vector<12x32xf32>,
    %c1_397 = arith.constant 1 : index
    %c0_398 = arith.constant 0 : index
    %c8_399 = arith.constant 8 : index
    %255 = vector.load %arg1[%c1_397, %c0_398, %c8_399] : memref<2x16x40xf32, #tpu.memory_space<vmem>>, vector<1x12x32xf32>
    %256 = vector.shape_cast %255 : vector<1x12x32xf32> to vector<12x32xf32>
    %c204 = arith.constant 204 : index
    %c0_400 = arith.constant 0 : index
    %257 = vector.load %arg5[%c204, %c0_400] : memref<216x160xf32, #tpu.memory_space<vmem>>, vector<12x32xf32>
    tpu.vector_store %arg5[%c204, %c0_400], %256 {strides = array<i32>} : memref<216x160xf32, #tpu.memory_space<vmem>>, vector<12x32xf32>,
    %c1_401 = arith.constant 1 : index
    %c1_402 = arith.constant 1 : index
    %c8_403 = arith.constant 8 : index
    %258 = vector.load %arg1[%c1_401, %c1_402, %c8_403] : memref<2x16x40xf32, #tpu.memory_space<vmem>>, vector<1x12x32xf32>
    %259 = vector.shape_cast %258 : vector<1x12x32xf32> to vector<12x32xf32>
    %c204_404 = arith.constant 204 : index
    %c32_405 = arith.constant 32 : index
    %260 = vector.load %arg5[%c204_404, %c32_405] : memref<216x160xf32, #tpu.memory_space<vmem>>, vector<12x32xf32>
    tpu.vector_store %arg5[%c204_404, %c32_405], %259 {strides = array<i32>} : memref<216x160xf32, #tpu.memory_space<vmem>>, vector<12x32xf32>,
    %c1_406 = arith.constant 1 : index
    %c2_407 = arith.constant 2 : index
    %c8_408 = arith.constant 8 : index
    %261 = vector.load %arg1[%c1_406, %c2_407, %c8_408] : memref<2x16x40xf32, #tpu.memory_space<vmem>>, vector<1x12x32xf32>
    %262 = vector.shape_cast %261 : vector<1x12x32xf32> to vector<12x32xf32>
    %c204_409 = arith.constant 204 : index
    %c64_410 = arith.constant 64 : index
    %263 = vector.load %arg5[%c204_409, %c64_410] : memref<216x160xf32, #tpu.memory_space<vmem>>, vector<12x32xf32>
    tpu.vector_store %arg5[%c204_409, %c64_410], %262 {strides = array<i32>} : memref<216x160xf32, #tpu.memory_space<vmem>>, vector<12x32xf32>,
    %c1_411 = arith.constant 1 : index
    %c3_412 = arith.constant 3 : index
    %c8_413 = arith.constant 8 : index
    %264 = vector.load %arg1[%c1_411, %c3_412, %c8_413] : memref<2x16x40xf32, #tpu.memory_space<vmem>>, vector<1x12x32xf32>
    %265 = vector.shape_cast %264 : vector<1x12x32xf32> to vector<12x32xf32>
    %c204_414 = arith.constant 204 : index
    %c96_415 = arith.constant 96 : index
    %266 = vector.load %arg5[%c204_414, %c96_415] : memref<216x160xf32, #tpu.memory_space<vmem>>, vector<12x32xf32>
    tpu.vector_store %arg5[%c204_414, %c96_415], %265 {strides = array<i32>} : memref<216x160xf32, #tpu.memory_space<vmem>>, vector<12x32xf32>,
    %c1_416 = arith.constant 1 : index
    %c4_417 = arith.constant 4 : index
    %c8_418 = arith.constant 8 : index
    %267 = vector.load %arg1[%c1_416, %c4_417, %c8_418] : memref<2x16x40xf32, #tpu.memory_space<vmem>>, vector<1x12x32xf32>
    %268 = vector.shape_cast %267 : vector<1x12x32xf32> to vector<12x32xf32>
    %c204_419 = arith.constant 204 : index
    %c128_420 = arith.constant 128 : index
    %269 = vector.load %arg5[%c204_419, %c128_420] : memref<216x160xf32, #tpu.memory_space<vmem>>, vector<12x32xf32>
    tpu.vector_store %arg5[%c204_419, %c128_420], %268 {strides = array<i32>} : memref<216x160xf32, #tpu.memory_space<vmem>>, vector<12x32xf32>,
    %c0_421 = arith.constant 0 : index
    %c0_422 = arith.constant 0 : index
    %270 = vector.load %arg5[%c0_421, %c0_422] : memref<216x160xf32, #tpu.memory_space<vmem>>, vector<216x160xf32>
    %271 = arith.truncf %270 : vector<216x160xf32> to vector<216x160xbf16>
    %c0_423 = arith.constant 0 : index
    %c0_424 = arith.constant 0 : index
    %272 = vector.load %arg2[%c0_423, %c0_424] : memref<160x128xbf16, #tpu.memory_space<vmem>>, vector<160x128xbf16>
    %cst = arith.constant dense<0.000000e+00> : vector<216x128xf32>
    %273 = tpu.matmul %271, %272, %cst {dimension_numbers = #tpu.dot_dimension_numbers<[1], [0], [0], [1], [0, 0, 1, 1], [], []>} : vector<216x160xbf16>, vector<160x128xbf16>, vector<216x128xf32> -> vector<216x128xf32>
    %c0_425 = arith.constant 0 : index
    %c0_426 = arith.constant 0 : index
    %274 = vector.load %arg3[%c0_425, %c0_426] : memref<1x128xf32, #tpu.memory_space<vmem>>, vector<1x128xf32>
    %275 = vector.broadcast %274 : vector<1x128xf32> to vector<216x128xf32>
    %276 = arith.addf %273, %275 : vector<216x128xf32>
    %c0_427 = arith.constant 0 : index
    %c0_428 = arith.constant 0 : index
    %277 = vector.load %arg4[%c0_427, %c0_428] : memref<216x128xf32, #tpu.memory_space<vmem>>, vector<216x128xf32>
    tpu.vector_store %arg4[%c0_427, %c0_428], %276 {strides = array<i32>} : memref<216x128xf32, #tpu.memory_space<vmem>>, vector<216x128xf32>,
    return
  }
  func.func @transform_0(%arg0: i32) -> (i32, i32, i32) {
    %c0_i32 = arith.constant 0 : i32
    %c0_i32_0 = arith.constant 0 : i32
    %c0_i32_1 = arith.constant 0 : i32
    %c0_i32_2 = arith.constant 0 : i32
    return %c0_i32, %c0_i32_0, %c0_i32_1 : i32, i32, i32
  }
  func.func @transform_1(%arg0: i32) -> (i32, i32) {
    %c0_i32 = arith.constant 0 : i32
    %c0_i32_0 = arith.constant 0 : i32
    %c0_i32_1 = arith.constant 0 : i32
    return %c0_i32, %c0_i32_0 : i32, i32
  }
  func.func @transform_2(%arg0: i32) -> (i32, i32) {
    %c0_i32 = arith.constant 0 : i32
    %c0_i32_0 = arith.constant 0 : i32
    %c0_i32_1 = arith.constant 0 : i32
    return %c0_i32, %c0_i32_0 : i32, i32
  }
  func.func @transform_3(%arg0: i32) -> (i32, i32) {
    %c0_i32 = arith.constant 0 : i32
    %c0_i32_0 = arith.constant 0 : i32
    %c0_i32_1 = arith.constant 0 : i32
    return %c0_i32, %c0_i32_0 : i32, i32
  }
}

</mosaic_0001>

<llo_original>
// kernel: _lambda_.1
$region0: #{_lambda_.1}
  #allocation0 [shape = 'u32[]', space=smem, size = 0x4, offset = 0x4, fixed_abs, tag = 'smem constant byte address 0x4 - core index']
  #allocation1 [shape = 'u32[144,128]{1,0:T(1,128)}', space=vmem, size = 0x12000, scoped, tag = 'internal scratch']
  #allocation2 [shape = 'f32[216,160]{1,0:T(8,128)}', space=vmem, size = 0x36000, scoped, tag = 'scratch operand']
  %s0 = inlined_call_operand.hbm [shape: f32[2,16,40], index: 0, kind: input, shape index: {}]
  %s1 = inlined_call_operand.hbm [shape: bf16[160,128], index: 1, kind: input, shape index: {}]
  %s2 = inlined_call_operand.vmem [shape: f32[1,128], index: 2, kind: input, shape index: {}]
  %s3 = inlined_call_operand.vmem [shape: f32[216,128], index: 3, kind: output, shape index: {}]
  %s4 = sld [smem:[#allocation0]]
  $region30: #{_lambda_.1} parent=0
    _
  %s6 = ssub.s32 1, %s4
  %s7 = scalar_select 0, %s6, %s4
  $region1: #{_lambda_.1} parent=0
    #allocation3 [shape = 'u8[16384]{0}', space=vmem, size = 0x4000, scoped, tag = 'input window, operand 0, single buffered']
    #allocation4 [shape = 's32[1]{0}', space=sflag, size = 0x4, scoped, tag = 'scoped memory for _lambda_.1']
    #allocation5 [shape = 'u8[40960]{0}', space=vmem, size = 0xa000, scoped, tag = 'input window, operand 1, single buffered']
    #allocation6 [shape = 's32[1]{0}', space=sflag, size = 0x4, scoped, tag = 'scoped memory for _lambda_.1']
    %8 = vsyncpa [#allocation4], 0
    %9 = vsyncpa [#allocation6], 0
    // Predicated region
    $region2: #{_lambda_.1} parent=1 // pred_check
      _
    $region3: #{_lambda_.1} parent=1 // pred_check_branch
      %11 = sbr.rel (0) target = $region5
    $region4: #{_lambda_.1} parent=1 // pred_region
      %s13 = ssub.s32 512, 512
      %14 = vsyncadd [#allocation4], %s13
      %s15 = sshll.u32 [#allocation3], 4
      %s16 = int_to_ptr.vmem [resolvable:$true] %s15
      %21 = dma.hbm_to_vmem [thread:$0]  %s0, 512, %s16, [#allocation4], 128, 128, 8
    $region5: #{_lambda_.1} parent=1 // pred_fallthru
      _
    // Predicated region
    $region6: #{_lambda_.1} parent=1 // pred_check
      _
    $region7: #{_lambda_.1} parent=1 // pred_check_branch
      %23 = sbr.rel (0) target = $region9
    $region8: #{_lambda_.1} parent=1 // pred_region
      %s25 = ssub.s32 1280, 1280
      %26 = vsyncadd [#allocation6], %s25
      %s27 = sshll.u32 [#allocation5], 4
      %s28 = int_to_ptr.vmem [resolvable:$true] %s27
      %33 = dma.hbm_to_vmem [thread:$0]  %s1, 1280, %s28, [#allocation6], 64, 64, 4
    $region9: #{_lambda_.1} parent=1 // pred_fallthru
      _
    // Predicated region
    $region10: #{_lambda_.1} parent=1 // pred_check
      _
    $region11: #{_lambda_.1} parent=1 // pred_check_branch
      %35 = sbr.rel (0) target = $region13
    $region12: #{_lambda_.1} parent=1 // pred_region
      _
    $region13: #{_lambda_.1} parent=1 // pred_fallthru
      _
    // Predicated region
    $region14: #{_lambda_.1} parent=1 // pred_check
      _
    $region15: #{_lambda_.1} parent=1 // pred_check_branch
      %37 = sbr.rel (0) target = $region17
    $region16: #{_lambda_.1} parent=1 // pred_region
      %38 = dma.done [#allocation4], 512
    $region17: #{_lambda_.1} parent=1 // pred_fallthru
      _
    // Predicated region
    $region18: #{_lambda_.1} parent=1 // pred_check
      _
    $region19: #{_lambda_.1} parent=1 // pred_check_branch
      %40 = sbr.rel (0) target = $region21
    $region20: #{_lambda_.1} parent=1 // pred_region
      %41 = dma.done [#allocation6], 1280
    $region21: #{_lambda_.1} parent=1 // pred_fallthru
      _
    %v43 = vld [vmem:[#allocation3] sm:$0xff]
    %v44 = vld [vmem:[#allocation3 + $0x8] sm:$0xf]
    %vm45 = vcmask 261120
    %46 = vst.msk [vmem:[#allocation2] sm:$0xff] %vm45, %v43
    %vm47 = vcmask 257024
    %48 = vst.msk [vmem:[#allocation2 + $0x10] sm:$0xf] %vm47, %v44
    %v49 = vld [vmem:[#allocation3 + $0x1] sm:$0xff]
    %v50 = vld [vmem:[#allocation3 + $0x9] sm:$0xf]
    %53 = vrot.lane.b32.xlu0 %v49, 32
    %v54 = vpop.permute.xlu0 %53
    %55 = vrot.lane.b32.xlu0 %v50, 32
    %v56 = vpop.permute.xlu0 %55
    %vm59 = vcmask 523520
    %60 = vst.msk [vmem:[#allocation2] sm:$0xff] %vm59, %v54
    %vm61 = vcmask 519424
    %62 = vst.msk [vmem:[#allocation2 + $0x10] sm:$0xf] %vm61, %v56
    %v63 = vld [vmem:[#allocation3 + $0x2] sm:$0xff]
    %v64 = vld [vmem:[#allocation3 + $0xa] sm:$0xf]
    %67 = vrot.lane.b32.xlu0 %v63, 64
    %v68 = vpop.permute.xlu0 %67
    %69 = vrot.lane.b32.xlu0 %v64, 64
    %v70 = vpop.permute.xlu0 %69
    %vm73 = vcmask 785920
    %74 = vst.msk [vmem:[#allocation2] sm:$0xff] %vm73, %v68
    %vm75 = vcmask 781824
    %76 = vst.msk [vmem:[#allocation2 + $0x10] sm:$0xf] %vm75, %v70
    %v77 = vld [vmem:[#allocation3 + $0x3] sm:$0xff]
    %v78 = vld [vmem:[#allocation3 + $0xb] sm:$0xf]
    %81 = vrot.lane.b32.xlu0 %v77, 96
    %v82 = vpop.permute.xlu0 %81
    %83 = vrot.lane.b32.xlu0 %v78, 96
    %v84 = vpop.permute.xlu0 %83
    %vm87 = vcmask 1048320
    %88 = vst.msk [vmem:[#allocation2] sm:$0xff] %vm87, %v82
    %vm89 = vcmask 1044224
    %90 = vst.msk [vmem:[#allocation2 + $0x10] sm:$0xf] %vm89, %v84
    %v91 = vld [vmem:[#allocation3 + $0x4] sm:$0xff]
    %v92 = vld [vmem:[#allocation3 + $0xc] sm:$0xf]
    %93 = vst.msk [vmem:[#allocation2 + $0x8] sm:$0xff] %vm45, %v91
    %94 = vst.msk [vmem:[#allocation2 + $0x18] sm:$0xf] %vm47, %v92
    %v95 = vld [vmem:[#allocation3] sm:$0xff]
    %v96 = vld [vmem:[#allocation3 + $0x8] sm:$0xf]
    %vm99 = vcmask 1043456
    %v100 = vrot.slane %v95, 4
    %v101 = vrot.slane %v96, 4
    %v102 = vsel %vm99, %v100, %v101
    %103 = vrot.lane.b32.xlu0 %v100, 127
    %v104 = vpop.permute.xlu0 %103
    %105 = vrot.lane.b32.xlu0 %v102, 127
    %v106 = vpop.permute.xlu0 %105
    %vm109 = vcmask 261124
    %110 = vst.msk [vmem:[#allocation2 + $0x10] sm:$0xf0] %vm109, %v104
    %111 = vst.msk [vmem:[#allocation2 + $0x20] sm:$0xff] %vm45, %v106
    %v112 = vld [vmem:[#allocation3 + $0x1] sm:$0xff]
    %v113 = vld [vmem:[#allocation3 + $0x9] sm:$0xf]
    %v116 = vrot.slane %v112, 4
    %v117 = vrot.slane %v113, 4
    %v118 = vsel %vm99, %v116, %v117
    %119 = vrot.lane.b32.xlu0 %v116, 31
    %v120 = vpop.permute.xlu0 %119
    %121 = vrot.lane.b32.xlu0 %v118, 31
    %v122 = vpop.permute.xlu0 %121
    %vm125 = vcmask 523524
    %126 = vst.msk [vmem:[#allocation2 + $0x10] sm:$0xf0] %vm125, %v120
    %127 = vst.msk [vmem:[#allocation2 + $0x20] sm:$0xff] %vm59, %v122
    %v128 = vld [vmem:[#allocation3 + $0x2] sm:$0xff]
    %v129 = vld [vmem:[#allocation3 + $0xa] sm:$0xf]
    %v132 = vrot.slane %v128, 4
    %v133 = vrot.slane %v129, 4
    %v134 = vsel %vm99, %v132, %v133
    %135 = vrot.lane.b32.xlu0 %v132, 63
    %v136 = vpop.permute.xlu0 %135
    %137 = vrot.lane.b32.xlu0 %v134, 63
    %v138 = vpop.permute.xlu0 %137
    %vm141 = vcmask 785924
    %142 = vst.msk [vmem:[#allocation2 + $0x10] sm:$0xf0] %vm141, %v136
    %143 = vst.msk [vmem:[#allocation2 + $0x20] sm:$0xff] %vm73, %v138
    %v144 = vld [vmem:[#allocation3 + $0x3] sm:$0xff]
    %v145 = vld [vmem:[#allocation3 + $0xb] sm:$0xf]
    %v148 = vrot.slane %v144, 4
    %v149 = vrot.slane %v145, 4
    %v150 = vsel %vm99, %v148, %v149
    %151 = vrot.lane.b32.xlu0 %v148, 95
    %v152 = vpop.permute.xlu0 %151
    %153 = vrot.lane.b32.xlu0 %v150, 95
    %v154 = vpop.permute.xlu0 %153
    %vm157 = vcmask 1048324
    %158 = vst.msk [vmem:[#allocation2 + $0x10] sm:$0xf0] %vm157, %v152
    %159 = vst.msk [vmem:[#allocation2 + $0x20] sm:$0xff] %vm87, %v154
    %v160 = vld [vmem:[#allocation3 + $0x4] sm:$0xff]
    %v161 = vld [vmem:[#allocation3 + $0xc] sm:$0xf]
    %v164 = vrot.slane %v160, 4
    %v165 = vrot.slane %v161, 4
    %v166 = vsel %vm99, %v164, %v165
    %167 = vrot.lane.b32.xlu0 %v164, 127
    %v168 = vpop.permute.xlu0 %167
    %169 = vrot.lane.b32.xlu0 %v166, 127
    %v170 = vpop.permute.xlu0 %169
    %173 = vst.msk [vmem:[#allocation2 + $0x18] sm:$0xf0] %vm109, %v168
    %174 = vst.msk [vmem:[#allocation2 + $0x28] sm:$0xff] %vm45, %v170
    %v175 = vld [vmem:[#allocation3] sm:$0xff]
    %v176 = vld [vmem:[#allocation3 + $0x8] sm:$0xf]
    %179 = vrot.lane.b32.xlu0 %v175, 126
    %v180 = vpop.permute.xlu0 %179
    %181 = vrot.lane.b32.xlu0 %v176, 126
    %v182 = vpop.permute.xlu0 %181
    %185 = vst.msk [vmem:[#allocation2 + $0x30] sm:$0xff] %vm45, %v180
    %186 = vst.msk [vmem:[#allocation2 + $0x40] sm:$0xf] %vm47, %v182
    %v187 = vld [vmem:[#allocation3 + $0x1] sm:$0xff]
    %v188 = vld [vmem:[#allocation3 + $0x9] sm:$0xf]
    %191 = vrot.lane.b32.xlu0 %v187, 30
    %v192 = vpop.permute.xlu0 %191
    %193 = vrot.lane.b32.xlu0 %v188, 30
    %v194 = vpop.permute.xlu0 %193
    %197 = vst.msk [vmem:[#allocation2 + $0x30] sm:$0xff] %vm59, %v192
    %198 = vst.msk [vmem:[#allocation2 + $0x40] sm:$0xf] %vm61, %v194
    %v199 = vld [vmem:[#allocation3 + $0x2] sm:$0xff]
    %v200 = vld [vmem:[#allocation3 + $0xa] sm:$0xf]
    %203 = vrot.lane.b32.xlu0 %v199, 62
    %v204 = vpop.permute.xlu0 %203
    %205 = vrot.lane.b32.xlu0 %v200, 62
    %v206 = vpop.permute.xlu0 %205
    %209 = vst.msk [vmem:[#allocation2 + $0x30] sm:$0xff] %vm73, %v204
    %210 = vst.msk [vmem:[#allocation2 + $0x40] sm:$0xf] %vm75, %v206
    %v211 = vld [vmem:[#allocation3 + $0x3] sm:$0xff]
    %v212 = vld [vmem:[#allocation3 + $0xb] sm:$0xf]
    %215 = vrot.lane.b32.xlu0 %v211, 94
    %v216 = vpop.permute.xlu0 %215
    %217 = vrot.lane.b32.xlu0 %v212, 94
    %v218 = vpop.permute.xlu0 %217
    %221 = vst.msk [vmem:[#allocation2 + $0x30] sm:$0xff] %vm87, %v216
    %222 = vst.msk [vmem:[#allocation2 + $0x40] sm:$0xf] %vm89, %v218
    %v223 = vld [vmem:[#allocation3 + $0x4] sm:$0xff]
    %v224 = vld [vmem:[#allocation3 + $0xc] sm:$0xf]
    %227 = vrot.lane.b32.xlu0 %v223, 126
    %v228 = vpop.permute.xlu0 %227
    %229 = vrot.lane.b32.xlu0 %v224, 126
    %v230 = vpop.permute.xlu0 %229
    %233 = vst.msk [vmem:[#allocation2 + $0x38] sm:$0xff] %vm45, %v228
    %234 = vst.msk [vmem:[#allocation2 + $0x48] sm:$0xf] %vm47, %v230
    %v235 = vld [vmem:[#allocation3] sm:$0xff]
    %v236 = vld [vmem:[#allocation3 + $0x8] sm:$0xf]
    %v239 = vrot.slane %v235, 4
    %v240 = vrot.slane %v236, 4
    %v241 = vsel %vm99, %v239, %v240
    %242 = vrot.lane.b32.xlu0 %v239, 125
    %v243 = vpop.permute.xlu0 %242
    %244 = vrot.lane.b32.xlu0 %v241, 125
    %v245 = vpop.permute.xlu0 %244
    %248 = vst.msk [vmem:[#allocation2 + $0x40] sm:$0xf0] %vm109, %v243
    %249 = vst.msk [vmem:[#allocation2 + $0x50] sm:$0xff] %vm45, %v245
    %v250 = vld [vmem:[#allocation3 + $0x1] sm:$0xff]
    %v251 = vld [vmem:[#allocation3 + $0x9] sm:$0xf]
    %v254 = vrot.slane %v250, 4
    %v255 = vrot.slane %v251, 4
    %v256 = vsel %vm99, %v254, %v255
    %257 = vrot.lane.b32.xlu0 %v254, 29
    %v258 = vpop.permute.xlu0 %257
    %259 = vrot.lane.b32.xlu0 %v256, 29
    %v260 = vpop.permute.xlu0 %259
    %263 = vst.msk [vmem:[#allocation2 + $0x40] sm:$0xf0] %vm125, %v258
    %264 = vst.msk [vmem:[#allocation2 + $0x50] sm:$0xff] %vm59, %v260
    %v265 = vld [vmem:[#allocation3 + $0x2] sm:$0xff]
    %v266 = vld [vmem:[#allocation3 + $0xa] sm:$0xf]
    %v269 = vrot.slane %v265, 4
    %v270 = vrot.slane %v266, 4
    %v271 = vsel %vm99, %v269, %v270
    %272 = vrot.lane.b32.xlu0 %v269, 61
    %v273 = vpop.permute.xlu0 %272
    %274 = vrot.lane.b32.xlu0 %v271, 61
    %v275 = vpop.permute.xlu0 %274
    %278 = vst.msk [vmem:[#allocation2 + $0x40] sm:$0xf0] %vm141, %v273
    %279 = vst.msk [vmem:[#allocation2 + $0x50] sm:$0xff] %vm73, %v275
    %v280 = vld [vmem:[#allocation3 + $0x3] sm:$0xff]
    %v281 = vld [vmem:[#allocation3 + $0xb] sm:$0xf]
    %v284 = vrot.slane %v280, 4
    %v285 = vrot.slane %v281, 4
    %v286 = vsel %vm99, %v284, %v285
    %287 = vrot.lane.b32.xlu0 %v284, 93
    %v288 = vpop.permute.xlu0 %287
    %289 = vrot.lane.b32.xlu0 %v286, 93
    %v290 = vpop.permute.xlu0 %289
    %293 = vst.msk [vmem:[#allocation2 + $0x40] sm:$0xf0] %vm157, %v288
    %294 = vst.msk [vmem:[#allocation2 + $0x50] sm:$0xff] %vm87, %v290
    %v295 = vld [vmem:[#allocation3 + $0x4] sm:$0xff]
    %v296 = vld [vmem:[#allocation3 + $0xc] sm:$0xf]
    %v299 = vrot.slane %v295, 4
    %v300 = vrot.slane %v296, 4
    %v301 = vsel %vm99, %v299, %v300
    %302 = vrot.lane.b32.xlu0 %v299, 125
    %v303 = vpop.permute.xlu0 %302
    %304 = vrot.lane.b32.xlu0 %v301, 125
    %v305 = vpop.permute.xlu0 %304
    %308 = vst.msk [vmem:[#allocation2 + $0x48] sm:$0xf0] %vm109, %v303
    %309 = vst.msk [vmem:[#allocation2 + $0x58] sm:$0xff] %vm45, %v305
    %v310 = vld [vmem:[#allocation3] sm:$0xff]
    %v311 = vld [vmem:[#allocation3 + $0x8] sm:$0xf]
    %314 = vrot.lane.b32.xlu0 %v310, 124
    %v315 = vpop.permute.xlu0 %314
    %316 = vrot.lane.b32.xlu0 %v311, 124
    %v317 = vpop.permute.xlu0 %316
    %320 = vst.msk [vmem:[#allocation2 + $0x60] sm:$0xff] %vm45, %v315
    %321 = vst.msk [vmem:[#allocation2 + $0x70] sm:$0xf] %vm47, %v317
    %v322 = vld [vmem:[#allocation3 + $0x1] sm:$0xff]
    %v323 = vld [vmem:[#allocation3 + $0x9] sm:$0xf]
    %326 = vrot.lane.b32.xlu0 %v322, 28
    %v327 = vpop.permute.xlu0 %326
    %328 = vrot.lane.b32.xlu0 %v323, 28
    %v329 = vpop.permute.xlu0 %328
    %332 = vst.msk [vmem:[#allocation2 + $0x60] sm:$0xff] %vm59, %v327
    %333 = vst.msk [vmem:[#allocation2 + $0x70] sm:$0xf] %vm61, %v329
    %v334 = vld [vmem:[#allocation3 + $0x2] sm:$0xff]
    %v335 = vld [vmem:[#allocation3 + $0xa] sm:$0xf]
    %338 = vrot.lane.b32.xlu0 %v334, 60
    %v339 = vpop.permute.xlu0 %338
    %340 = vrot.lane.b32.xlu0 %v335, 60
    %v341 = vpop.permute.xlu0 %340
    %344 = vst.msk [vmem:[#allocation2 + $0x60] sm:$0xff] %vm73, %v339
    %345 = vst.msk [vmem:[#allocation2 + $0x70] sm:$0xf] %vm75, %v341
    %v346 = vld [vmem:[#allocation3 + $0x3] sm:$0xff]
    %v347 = vld [vmem:[#allocation3 + $0xb] sm:$0xf]
    %350 = vrot.lane.b32.xlu0 %v346, 92
    %v351 = vpop.permute.xlu0 %350
    %352 = vrot.lane.b32.xlu0 %v347, 92
    %v353 = vpop.permute.xlu0 %352
    %356 = vst.msk [vmem:[#allocation2 + $0x60] sm:$0xff] %vm87, %v351
    %357 = vst.msk [vmem:[#allocation2 + $0x70] sm:$0xf] %vm89, %v353
    %v358 = vld [vmem:[#allocation3 + $0x4] sm:$0xff]
    %v359 = vld [vmem:[#allocation3 + $0xc] sm:$0xf]
    %362 = vrot.lane.b32.xlu0 %v358, 124
    %v363 = vpop.permute.xlu0 %362
    %364 = vrot.lane.b32.xlu0 %v359, 124
    %v365 = vpop.permute.xlu0 %364
    %368 = vst.msk [vmem:[#allocation2 + $0x68] sm:$0xff] %vm45, %v363
    %369 = vst.msk [vmem:[#allocation2 + $0x78] sm:$0xf] %vm47, %v365
    %v370 = vld [vmem:[#allocation3] sm:$0xff]
    %v371 = vld [vmem:[#allocation3 + $0x8] sm:$0xf]
    %v374 = vrot.slane %v370, 4
    %v375 = vrot.slane %v371, 4
    %v376 = vsel %vm99, %v374, %v375
    %377 = vrot.lane.b32.xlu0 %v374, 123
    %v378 = vpop.permute.xlu0 %377
    %379 = vrot.lane.b32.xlu0 %v376, 123
    %v380 = vpop.permute.xlu0 %379
    %383 = vst.msk [vmem:[#allocation2 + $0x70] sm:$0xf0] %vm109, %v378
    %384 = vst.msk [vmem:[#allocation2 + $0x80] sm:$0xff] %vm45, %v380
    %v385 = vld [vmem:[#allocation3 + $0x1] sm:$0xff]
    %v386 = vld [vmem:[#allocation3 + $0x9] sm:$0xf]
    %v389 = vrot.slane %v385, 4
    %v390 = vrot.slane %v386, 4
    %v391 = vsel %vm99, %v389, %v390
    %392 = vrot.lane.b32.xlu0 %v389, 27
    %v393 = vpop.permute.xlu0 %392
    %394 = vrot.lane.b32.xlu0 %v391, 27
    %v395 = vpop.permute.xlu0 %394
    %398 = vst.msk [vmem:[#allocation2 + $0x70] sm:$0xf0] %vm125, %v393
    %399 = vst.msk [vmem:[#allocation2 + $0x80] sm:$0xff] %vm59, %v395
    %v400 = vld [vmem:[#allocation3 + $0x2] sm:$0xff]
    %v401 = vld [vmem:[#allocation3 + $0xa] sm:$0xf]
    %v404 = vrot.slane %v400, 4
    %v405 = vrot.slane %v401, 4
    %v406 = vsel %vm99, %v404, %v405
    %407 = vrot.lane.b32.xlu0 %v404, 59
    %v408 = vpop.permute.xlu0 %407
    %409 = vrot.lane.b32.xlu0 %v406, 59
    %v410 = vpop.permute.xlu0 %409
    %413 = vst.msk [vmem:[#allocation2 + $0x70] sm:$0xf0] %vm141, %v408
    %414 = vst.msk [vmem:[#allocation2 + $0x80] sm:$0xff] %vm73, %v410
    %v415 = vld [vmem:[#allocation3 + $0x3] sm:$0xff]
    %v416 = vld [vmem:[#allocation3 + $0xb] sm:$0xf]
    %v419 = vrot.slane %v415, 4
    %v420 = vrot.slane %v416, 4
    %v421 = vsel %vm99, %v419, %v420
    %422 = vrot.lane.b32.xlu0 %v419, 91
    %v423 = vpop.permute.xlu0 %422
    %424 = vrot.lane.b32.xlu0 %v421, 91
    %v425 = vpop.permute.xlu0 %424
    %428 = vst.msk [vmem:[#allocation2 + $0x70] sm:$0xf0] %vm157, %v423
    %429 = vst.msk [vmem:[#allocation2 + $0x80] sm:$0xff] %vm87, %v425
    %v430 = vld [vmem:[#allocation3 + $0x4] sm:$0xff]
    %v431 = vld [vmem:[#allocation3 + $0xc] sm:$0xf]
    %v434 = vrot.slane %v430, 4
    %v435 = vrot.slane %v431, 4
    %v436 = vsel %vm99, %v434, %v435
    %437 = vrot.lane.b32.xlu0 %v434, 123
    %v438 = vpop.permute.xlu0 %437
    %439 = vrot.lane.b32.xlu0 %v436, 123
    %v440 = vpop.permute.xlu0 %439
    %443 = vst.msk [vmem:[#allocation2 + $0x78] sm:$0xf0] %vm109, %v438
    %444 = vst.msk [vmem:[#allocation2 + $0x88] sm:$0xff] %vm45, %v440
    %v445 = vld [vmem:[#allocation3] sm:$0xff]
    %v446 = vld [vmem:[#allocation3 + $0x8] sm:$0xf]
    %449 = vrot.lane.b32.xlu0 %v445, 122
    %v450 = vpop.permute.xlu0 %449
    %451 = vrot.lane.b32.xlu0 %v446, 122
    %v452 = vpop.permute.xlu0 %451
    %455 = vst.msk [vmem:[#allocation2 + $0x90] sm:$0xff] %vm45, %v450
    %456 = vst.msk [vmem:[#allocation2 + $0xa0] sm:$0xf] %vm47, %v452
    %v457 = vld [vmem:[#allocation3 + $0x1] sm:$0xff]
    %v458 = vld [vmem:[#allocation3 + $0x9] sm:$0xf]
    %461 = vrot.lane.b32.xlu0 %v457, 26
    %v462 = vpop.permute.xlu0 %461
    %463 = vrot.lane.b32.xlu0 %v458, 26
    %v464 = vpop.permute.xlu0 %463
    %467 = vst.msk [vmem:[#allocation2 + $0x90] sm:$0xff] %vm59, %v462
    %468 = vst.msk [vmem:[#allocation2 + $0xa0] sm:$0xf] %vm61, %v464
    %v469 = vld [vmem:[#allocation3 + $0x2] sm:$0xff]
    %v470 = vld [vmem:[#allocation3 + $0xa] sm:$0xf]
    %473 = vrot.lane.b32.xlu0 %v469, 58
    %v474 = vpop.permute.xlu0 %473
    %475 = vrot.lane.b32.xlu0 %v470, 58
    %v476 = vpop.permute.xlu0 %475
    %479 = vst.msk [vmem:[#allocation2 + $0x90] sm:$0xff] %vm73, %v474
    %480 = vst.msk [vmem:[#allocation2 + $0xa0] sm:$0xf] %vm75, %v476
    %v481 = vld [vmem:[#allocation3 + $0x3] sm:$0xff]
    %v482 = vld [vmem:[#allocation3 + $0xb] sm:$0xf]
    %485 = vrot.lane.b32.xlu0 %v481, 90
    %v486 = vpop.permute.xlu0 %485
    %487 = vrot.lane.b32.xlu0 %v482, 90
    %v488 = vpop.permute.xlu0 %487
    %491 = vst.msk [vmem:[#allocation2 + $0x90] sm:$0xff] %vm87, %v486
    %492 = vst.msk [vmem:[#allocation2 + $0xa0] sm:$0xf] %vm89, %v488
    %v493 = vld [vmem:[#allocation3 + $0x4] sm:$0xff]
    %v494 = vld [vmem:[#allocation3 + $0xc] sm:$0xf]
    %497 = vrot.lane.b32.xlu0 %v493, 122
    %v498 = vpop.permute.xlu0 %497
    %499 = vrot.lane.b32.xlu0 %v494, 122
    %v500 = vpop.permute.xlu0 %499
    %503 = vst.msk [vmem:[#allocation2 + $0x98] sm:$0xff] %vm45, %v498
    %504 = vst.msk [vmem:[#allocation2 + $0xa8] sm:$0xf] %vm47, %v500
    %v505 = vld [vmem:[#allocation3] sm:$0xff]
    %v506 = vld [vmem:[#allocation3 + $0x8] sm:$0xf]
    %v509 = vrot.slane %v505, 4
    %v510 = vrot.slane %v506, 4
    %v511 = vsel %vm99, %v509, %v510
    %512 = vrot.lane.b32.xlu0 %v509, 121
    %v513 = vpop.permute.xlu0 %512
    %514 = vrot.lane.b32.xlu0 %v511, 121
    %v515 = vpop.permute.xlu0 %514
    %518 = vst.msk [vmem:[#allocation2 + $0xa0] sm:$0xf0] %vm109, %v513
    %519 = vst.msk [vmem:[#allocation2 + $0xb0] sm:$0xff] %vm45, %v515
    %v520 = vld [vmem:[#allocation3 + $0x1] sm:$0xff]
    %v521 = vld [vmem:[#allocation3 + $0x9] sm:$0xf]
    %v524 = vrot.slane %v520, 4
    %v525 = vrot.slane %v521, 4
    %v526 = vsel %vm99, %v524, %v525
    %527 = vrot.lane.b32.xlu0 %v524, 25
    %v528 = vpop.permute.xlu0 %527
    %529 = vrot.lane.b32.xlu0 %v526, 25
    %v530 = vpop.permute.xlu0 %529
    %533 = vst.msk [vmem:[#allocation2 + $0xa0] sm:$0xf0] %vm125, %v528
    %534 = vst.msk [vmem:[#allocation2 + $0xb0] sm:$0xff] %vm59, %v530
    %v535 = vld [vmem:[#allocation3 + $0x2] sm:$0xff]
    %v536 = vld [vmem:[#allocation3 + $0xa] sm:$0xf]
    %v539 = vrot.slane %v535, 4
    %v540 = vrot.slane %v536, 4
    %v541 = vsel %vm99, %v539, %v540
    %542 = vrot.lane.b32.xlu0 %v539, 57
    %v543 = vpop.permute.xlu0 %542
    %544 = vrot.lane.b32.xlu0 %v541, 57
    %v545 = vpop.permute.xlu0 %544
    %548 = vst.msk [vmem:[#allocation2 + $0xa0] sm:$0xf0] %vm141, %v543
    %549 = vst.msk [vmem:[#allocation2 + $0xb0] sm:$0xff] %vm73, %v545
    %v550 = vld [vmem:[#allocation3 + $0x3] sm:$0xff]
    %v551 = vld [vmem:[#allocation3 + $0xb] sm:$0xf]
    %v554 = vrot.slane %v550, 4
    %v555 = vrot.slane %v551, 4
    %v556 = vsel %vm99, %v554, %v555
    %557 = vrot.lane.b32.xlu0 %v554, 89
    %v558 = vpop.permute.xlu0 %557
    %559 = vrot.lane.b32.xlu0 %v556, 89
    %v560 = vpop.permute.xlu0 %559
    %563 = vst.msk [vmem:[#allocation2 + $0xa0] sm:$0xf0] %vm157, %v558
    %564 = vst.msk [vmem:[#allocation2 + $0xb0] sm:$0xff] %vm87, %v560
    %v565 = vld [vmem:[#allocation3 + $0x4] sm:$0xff]
    %v566 = vld [vmem:[#allocation3 + $0xc] sm:$0xf]
    %v569 = vrot.slane %v565, 4
    %v570 = vrot.slane %v566, 4
    %v571 = vsel %vm99, %v569, %v570
    %572 = vrot.lane.b32.xlu0 %v569, 121
    %v573 = vpop.permute.xlu0 %572
    %574 = vrot.lane.b32.xlu0 %v571, 121
    %v575 = vpop.permute.xlu0 %574
    %578 = vst.msk [vmem:[#allocation2 + $0xa8] sm:$0xf0] %vm109, %v573
    %579 = vst.msk [vmem:[#allocation2 + $0xb8] sm:$0xff] %vm45, %v575
    %v580 = vld [vmem:[#allocation3] sm:$0xff]
    %v581 = vld [vmem:[#allocation3 + $0x8] sm:$0xf]
    %584 = vrot.lane.b32.xlu0 %v580, 120
    %v585 = vpop.permute.xlu0 %584
    %586 = vrot.lane.b32.xlu0 %v581, 120
    %v587 = vpop.permute.xlu0 %586
    %590 = vst.msk [vmem:[#allocation2 + $0xc0] sm:$0xff] %vm45, %v585
    %591 = vst.msk [vmem:[#allocation2 + $0xd0] sm:$0xf] %vm47, %v587
    %v592 = vld [vmem:[#allocation3 + $0x1] sm:$0xff]
    %v593 = vld [vmem:[#allocation3 + $0x9] sm:$0xf]
    %596 = vrot.lane.b32.xlu0 %v592, 24
    %v597 = vpop.permute.xlu0 %596
    %598 = vrot.lane.b32.xlu0 %v593, 24
    %v599 = vpop.permute.xlu0 %598
    %602 = vst.msk [vmem:[#allocation2 + $0xc0] sm:$0xff] %vm59, %v597
    %603 = vst.msk [vmem:[#allocation2 + $0xd0] sm:$0xf] %vm61, %v599
    %v604 = vld [vmem:[#allocation3 + $0x2] sm:$0xff]
    %v605 = vld [vmem:[#allocation3 + $0xa] sm:$0xf]
    %608 = vrot.lane.b32.xlu0 %v604, 56
    %v609 = vpop.permute.xlu0 %608
    %610 = vrot.lane.b32.xlu0 %v605, 56
    %v611 = vpop.permute.xlu0 %610
    %614 = vst.msk [vmem:[#allocation2 + $0xc0] sm:$0xff] %vm73, %v609
    %615 = vst.msk [vmem:[#allocation2 + $0xd0] sm:$0xf] %vm75, %v611
    %v616 = vld [vmem:[#allocation3 + $0x3] sm:$0xff]
    %v617 = vld [vmem:[#allocation3 + $0xb] sm:$0xf]
    %620 = vrot.lane.b32.xlu0 %v616, 88
    %v621 = vpop.permute.xlu0 %620
    %622 = vrot.lane.b32.xlu0 %v617, 88
    %v623 = vpop.permute.xlu0 %622
    %626 = vst.msk [vmem:[#allocation2 + $0xc0] sm:$0xff] %vm87, %v621
    %627 = vst.msk [vmem:[#allocation2 + $0xd0] sm:$0xf] %vm89, %v623
    %v628 = vld [vmem:[#allocation3 + $0x4] sm:$0xff]
    %v629 = vld [vmem:[#allocation3 + $0xc] sm:$0xf]
    %632 = vrot.lane.b32.xlu0 %v628, 120
    %v633 = vpop.permute.xlu0 %632
    %634 = vrot.lane.b32.xlu0 %v629, 120
    %v635 = vpop.permute.xlu0 %634
    %638 = vst.msk [vmem:[#allocation2 + $0xc8] sm:$0xff] %vm45, %v633
    %639 = vst.msk [vmem:[#allocation2 + $0xd8] sm:$0xf] %vm47, %v635
    %s640 = scalar_lea.vmem [#allocation3], 16
    %v641 = vld [vmem:[%s640] sm:$0xff]
    %v642 = vld [vmem:[%s640 + $0x8] sm:$0xf]
    %v645 = vrot.slane %v641, 4
    %v646 = vrot.slane %v642, 4
    %v647 = vsel %vm99, %v645, %v646
    %650 = vst.msk [vmem:[#allocation2 + $0xd0] sm:$0xf0] %vm109, %v645
    %651 = vst.msk [vmem:[#allocation2 + $0xe0] sm:$0xff] %vm45, %v647
    %v652 = vld [vmem:[%s640 + $0x1] sm:$0xff]
    %v653 = vld [vmem:[%s640 + $0x9] sm:$0xf]
    %v656 = vrot.slane %v652, 4
    %v657 = vrot.slane %v653, 4
    %v658 = vsel %vm99, %v656, %v657
    %659 = vrot.lane.b32.xlu0 %v656, 32
    %v660 = vpop.permute.xlu0 %659
    %661 = vrot.lane.b32.xlu0 %v658, 32
    %v662 = vpop.permute.xlu0 %661
    %665 = vst.msk [vmem:[#allocation2 + $0xd0] sm:$0xf0] %vm125, %v660
    %666 = vst.msk [vmem:[#allocation2 + $0xe0] sm:$0xff] %vm59, %v662
    %v667 = vld [vmem:[%s640 + $0x2] sm:$0xff]
    %v668 = vld [vmem:[%s640 + $0xa] sm:$0xf]
    %v671 = vrot.slane %v667, 4
    %v672 = vrot.slane %v668, 4
    %v673 = vsel %vm99, %v671, %v672
    %674 = vrot.lane.b32.xlu0 %v671, 64
    %v675 = vpop.permute.xlu0 %674
    %676 = vrot.lane.b32.xlu0 %v673, 64
    %v677 = vpop.permute.xlu0 %676
    %680 = vst.msk [vmem:[#allocation2 + $0xd0] sm:$0xf0] %vm141, %v675
    %681 = vst.msk [vmem:[#allocation2 + $0xe0] sm:$0xff] %vm73, %v677
    %v682 = vld [vmem:[%s640 + $0x3] sm:$0xff]
    %v683 = vld [vmem:[%s640 + $0xb] sm:$0xf]
    %v686 = vrot.slane %v682, 4
    %v687 = vrot.slane %v683, 4
    %v688 = vsel %vm99, %v686, %v687
    %689 = vrot.lane.b32.xlu0 %v686, 96
    %v690 = vpop.permute.xlu0 %689
    %691 = vrot.lane.b32.xlu0 %v688, 96
    %v692 = vpop.permute.xlu0 %691
    %695 = vst.msk [vmem:[#allocation2 + $0xd0] sm:$0xf0] %vm157, %v690
    %696 = vst.msk [vmem:[#allocation2 + $0xe0] sm:$0xff] %vm87, %v692
    %v697 = vld [vmem:[%s640 + $0x4] sm:$0xff]
    %v698 = vld [vmem:[%s640 + $0xc] sm:$0xf]
    %v701 = vrot.slane %v697, 4
    %v702 = vrot.slane %v698, 4
    %v703 = vsel %vm99, %v701, %v702
    %706 = vst.msk [vmem:[#allocation2 + $0xd8] sm:$0xf0] %vm109, %v701
    %707 = vst.msk [vmem:[#allocation2 + $0xe8] sm:$0xff] %vm45, %v703
    %v708 = vld [vmem:[%s640] sm:$0xff]
    %v709 = vld [vmem:[%s640 + $0x8] sm:$0xf]
    %712 = vrot.lane.b32.xlu0 %v708, 127
    %v713 = vpop.permute.xlu0 %712
    %714 = vrot.lane.b32.xlu0 %v709, 127
    %v715 = vpop.permute.xlu0 %714
    %718 = vst.msk [vmem:[#allocation2 + $0xf0] sm:$0xff] %vm45, %v713
    %719 = vst.msk [vmem:[#allocation2 + $0x100] sm:$0xf] %vm47, %v715
    %v720 = vld [vmem:[%s640 + $0x1] sm:$0xff]
    %v721 = vld [vmem:[%s640 + $0x9] sm:$0xf]
    %724 = vrot.lane.b32.xlu0 %v720, 31
    %v725 = vpop.permute.xlu0 %724
    %726 = vrot.lane.b32.xlu0 %v721, 31
    %v727 = vpop.permute.xlu0 %726
    %730 = vst.msk [vmem:[#allocation2 + $0xf0] sm:$0xff] %vm59, %v725
    %731 = vst.msk [vmem:[#allocation2 + $0x100] sm:$0xf] %vm61, %v727
    %v732 = vld [vmem:[%s640 + $0x2] sm:$0xff]
    %v733 = vld [vmem:[%s640 + $0xa] sm:$0xf]
    %736 = vrot.lane.b32.xlu0 %v732, 63
    %v737 = vpop.permute.xlu0 %736
    %738 = vrot.lane.b32.xlu0 %v733, 63
    %v739 = vpop.permute.xlu0 %738
    %742 = vst.msk [vmem:[#allocation2 + $0xf0] sm:$0xff] %vm73, %v737
    %743 = vst.msk [vmem:[#allocation2 + $0x100] sm:$0xf] %vm75, %v739
    %v744 = vld [vmem:[%s640 + $0x3] sm:$0xff]
    %v745 = vld [vmem:[%s640 + $0xb] sm:$0xf]
    %748 = vrot.lane.b32.xlu0 %v744, 95
    %v749 = vpop.permute.xlu0 %748
    %750 = vrot.lane.b32.xlu0 %v745, 95
    %v751 = vpop.permute.xlu0 %750
    %754 = vst.msk [vmem:[#allocation2 + $0xf0] sm:$0xff] %vm87, %v749
    %755 = vst.msk [vmem:[#allocation2 + $0x100] sm:$0xf] %vm89, %v751
    %v756 = vld [vmem:[%s640 + $0x4] sm:$0xff]
    %v757 = vld [vmem:[%s640 + $0xc] sm:$0xf]
    %760 = vrot.lane.b32.xlu0 %v756, 127
    %v761 = vpop.permute.xlu0 %760
    %762 = vrot.lane.b32.xlu0 %v757, 127
    %v763 = vpop.permute.xlu0 %762
    %766 = vst.msk [vmem:[#allocation2 + $0xf8] sm:$0xff] %vm45, %v761
    %767 = vst.msk [vmem:[#allocation2 + $0x108] sm:$0xf] %vm47, %v763
    %v768 = vld [vmem:[%s640] sm:$0xff]
    %v769 = vld [vmem:[%s640 + $0x8] sm:$0xf]
    %v772 = vrot.slane %v768, 4
    %v773 = vrot.slane %v769, 4
    %v774 = vsel %vm99, %v772, %v773
    %775 = vrot.lane.b32.xlu0 %v772, 126
    %v776 = vpop.permute.xlu0 %775
    %777 = vrot.lane.b32.xlu0 %v774, 126
    %v778 = vpop.permute.xlu0 %777
    %781 = vst.msk [vmem:[#allocation2 + $0x100] sm:$0xf0] %vm109, %v776
    %782 = vst.msk [vmem:[#allocation2 + $0x110] sm:$0xff] %vm45, %v778
    %v783 = vld [vmem:[%s640 + $0x1] sm:$0xff]
    %v784 = vld [vmem:[%s640 + $0x9] sm:$0xf]
    %v787 = vrot.slane %v783, 4
    %v788 = vrot.slane %v784, 4
    %v789 = vsel %vm99, %v787, %v788
    %790 = vrot.lane.b32.xlu0 %v787, 30
    %v791 = vpop.permute.xlu0 %790
    %792 = vrot.lane.b32.xlu0 %v789, 30
    %v793 = vpop.permute.xlu0 %792
    %796 = vst.msk [vmem:[#allocation2 + $0x100] sm:$0xf0] %vm125, %v791
    %797 = vst.msk [vmem:[#allocation2 + $0x110] sm:$0xff] %vm59, %v793
    %v798 = vld [vmem:[%s640 + $0x2] sm:$0xff]
    %v799 = vld [vmem:[%s640 + $0xa] sm:$0xf]
    %v802 = vrot.slane %v798, 4
    %v803 = vrot.slane %v799, 4
    %v804 = vsel %vm99, %v802, %v803
    %805 = vrot.lane.b32.xlu0 %v802, 62
    %v806 = vpop.permute.xlu0 %805
    %807 = vrot.lane.b32.xlu0 %v804, 62
    %v808 = vpop.permute.xlu0 %807
    %811 = vst.msk [vmem:[#allocation2 + $0x100] sm:$0xf0] %vm141, %v806
    %812 = vst.msk [vmem:[#allocation2 + $0x110] sm:$0xff] %vm73, %v808
    %v813 = vld [vmem:[%s640 + $0x3] sm:$0xff]
    %v814 = vld [vmem:[%s640 + $0xb] sm:$0xf]
    %v817 = vrot.slane %v813, 4
    %v818 = vrot.slane %v814, 4
    %v819 = vsel %vm99, %v817, %v818
    %820 = vrot.lane.b32.xlu0 %v817, 94
    %v821 = vpop.permute.xlu0 %820
    %822 = vrot.lane.b32.xlu0 %v819, 94
    %v823 = vpop.permute.xlu0 %822
    %826 = vst.msk [vmem:[#allocation2 + $0x100] sm:$0xf0] %vm157, %v821
    %827 = vst.msk [vmem:[#allocation2 + $0x110] sm:$0xff] %vm87, %v823
    %v828 = vld [vmem:[%s640 + $0x4] sm:$0xff]
    %v829 = vld [vmem:[%s640 + $0xc] sm:$0xf]
    %v832 = vrot.slane %v828, 4
    %v833 = vrot.slane %v829, 4
    %v834 = vsel %vm99, %v832, %v833
    %835 = vrot.lane.b32.xlu0 %v832, 126
    %v836 = vpop.permute.xlu0 %835
    %837 = vrot.lane.b32.xlu0 %v834, 126
    %v838 = vpop.permute.xlu0 %837
    %841 = vst.msk [vmem:[#allocation2 + $0x108] sm:$0xf0] %vm109, %v836
    %842 = vst.msk [vmem:[#allocation2 + $0x118] sm:$0xff] %vm45, %v838
    %v843 = vld [vmem:[%s640] sm:$0xff]
    %v844 = vld [vmem:[%s640 + $0x8] sm:$0xf]
    %847 = vrot.lane.b32.xlu0 %v843, 125
    %v848 = vpop.permute.xlu0 %847
    %849 = vrot.lane.b32.xlu0 %v844, 125
    %v850 = vpop.permute.xlu0 %849
    %853 = vst.msk [vmem:[#allocation2 + $0x120] sm:$0xff] %vm45, %v848
    %854 = vst.msk [vmem:[#allocation2 + $0x130] sm:$0xf] %vm47, %v850
    %v855 = vld [vmem:[%s640 + $0x1] sm:$0xff]
    %v856 = vld [vmem:[%s640 + $0x9] sm:$0xf]
    %859 = vrot.lane.b32.xlu0 %v855, 29
    %v860 = vpop.permute.xlu0 %859
    %861 = vrot.lane.b32.xlu0 %v856, 29
    %v862 = vpop.permute.xlu0 %861
    %865 = vst.msk [vmem:[#allocation2 + $0x120] sm:$0xff] %vm59, %v860
    %866 = vst.msk [vmem:[#allocation2 + $0x130] sm:$0xf] %vm61, %v862
    %v867 = vld [vmem:[%s640 + $0x2] sm:$0xff]
    %v868 = vld [vmem:[%s640 + $0xa] sm:$0xf]
    %871 = vrot.lane.b32.xlu0 %v867, 61
    %v872 = vpop.permute.xlu0 %871
    %873 = vrot.lane.b32.xlu0 %v868, 61
    %v874 = vpop.permute.xlu0 %873
    %877 = vst.msk [vmem:[#allocation2 + $0x120] sm:$0xff] %vm73, %v872
    %878 = vst.msk [vmem:[#allocation2 + $0x130] sm:$0xf] %vm75, %v874
    %v879 = vld [vmem:[%s640 + $0x3] sm:$0xff]
    %v880 = vld [vmem:[%s640 + $0xb] sm:$0xf]
    %883 = vrot.lane.b32.xlu0 %v879, 93
    %v884 = vpop.permute.xlu0 %883
    %885 = vrot.lane.b32.xlu0 %v880, 93
    %v886 = vpop.permute.xlu0 %885
    %889 = vst.msk [vmem:[#allocation2 + $0x120] sm:$0xff] %vm87, %v884
    %890 = vst.msk [vmem:[#allocation2 + $0x130] sm:$0xf] %vm89, %v886
    %v891 = vld [vmem:[%s640 + $0x4] sm:$0xff]
    %v892 = vld [vmem:[%s640 + $0xc] sm:$0xf]
    %895 = vrot.lane.b32.xlu0 %v891, 125
    %v896 = vpop.permute.xlu0 %895
    %897 = vrot.lane.b32.xlu0 %v892, 125
    %v898 = vpop.permute.xlu0 %897
    %901 = vst.msk [vmem:[#allocation2 + $0x128] sm:$0xff] %vm45, %v896
    %902 = vst.msk [vmem:[#allocation2 + $0x138] sm:$0xf] %vm47, %v898
    %v903 = vld [vmem:[%s640] sm:$0xff]
    %v904 = vld [vmem:[%s640 + $0x8] sm:$0xf]
    %v907 = vrot.slane %v903, 4
    %v908 = vrot.slane %v904, 4
    %v909 = vsel %vm99, %v907, %v908
    %910 = vrot.lane.b32.xlu0 %v907, 124
    %v911 = vpop.permute.xlu0 %910
    %912 = vrot.lane.b32.xlu0 %v909, 124
    %v913 = vpop.permute.xlu0 %912
    %916 = vst.msk [vmem:[#allocation2 + $0x130] sm:$0xf0] %vm109, %v911
    %917 = vst.msk [vmem:[#allocation2 + $0x140] sm:$0xff] %vm45, %v913
    %v918 = vld [vmem:[%s640 + $0x1] sm:$0xff]
    %v919 = vld [vmem:[%s640 + $0x9] sm:$0xf]
    %v922 = vrot.slane %v918, 4
    %v923 = vrot.slane %v919, 4
    %v924 = vsel %vm99, %v922, %v923
    %925 = vrot.lane.b32.xlu0 %v922, 28
    %v926 = vpop.permute.xlu0 %925
    %927 = vrot.lane.b32.xlu0 %v924, 28
    %v928 = vpop.permute.xlu0 %927
    %931 = vst.msk [vmem:[#allocation2 + $0x130] sm:$0xf0] %vm125, %v926
    %932 = vst.msk [vmem:[#allocation2 + $0x140] sm:$0xff] %vm59, %v928
    %v933 = vld [vmem:[%s640 + $0x2] sm:$0xff]
    %v934 = vld [vmem:[%s640 + $0xa] sm:$0xf]
    %v937 = vrot.slane %v933, 4
    %v938 = vrot.slane %v934, 4
    %v939 = vsel %vm99, %v937, %v938
    %940 = vrot.lane.b32.xlu0 %v937, 60
    %v941 = vpop.permute.xlu0 %940
    %942 = vrot.lane.b32.xlu0 %v939, 60
    %v943 = vpop.permute.xlu0 %942
    %946 = vst.msk [vmem:[#allocation2 + $0x130] sm:$0xf0] %vm141, %v941
    %947 = vst.msk [vmem:[#allocation2 + $0x140] sm:$0xff] %vm73, %v943
    %v948 = vld [vmem:[%s640 + $0x3] sm:$0xff]
    %v949 = vld [vmem:[%s640 + $0xb] sm:$0xf]
    %v952 = vrot.slane %v948, 4
    %v953 = vrot.slane %v949, 4
    %v954 = vsel %vm99, %v952, %v953
    %955 = vrot.lane.b32.xlu0 %v952, 92
    %v956 = vpop.permute.xlu0 %955
    %957 = vrot.lane.b32.xlu0 %v954, 92
    %v958 = vpop.permute.xlu0 %957
    %961 = vst.msk [vmem:[#allocation2 + $0x130] sm:$0xf0] %vm157, %v956
    %962 = vst.msk [vmem:[#allocation2 + $0x140] sm:$0xff] %vm87, %v958
    %v963 = vld [vmem:[%s640 + $0x4] sm:$0xff]
    %v964 = vld [vmem:[%s640 + $0xc] sm:$0xf]
    %v967 = vrot.slane %v963, 4
    %v968 = vrot.slane %v964, 4
    %v969 = vsel %vm99, %v967, %v968
    %970 = vrot.lane.b32.xlu0 %v967, 124
    %v971 = vpop.permute.xlu0 %970
    %972 = vrot.lane.b32.xlu0 %v969, 124
    %v973 = vpop.permute.xlu0 %972
    %976 = vst.msk [vmem:[#allocation2 + $0x138] sm:$0xf0] %vm109, %v971
    %977 = vst.msk [vmem:[#allocation2 + $0x148] sm:$0xff] %vm45, %v973
    %v978 = vld [vmem:[%s640] sm:$0xff]
    %v979 = vld [vmem:[%s640 + $0x8] sm:$0xf]
    %982 = vrot.lane.b32.xlu0 %v978, 123
    %v983 = vpop.permute.xlu0 %982
    %984 = vrot.lane.b32.xlu0 %v979, 123
    %v985 = vpop.permute.xlu0 %984
    %988 = vst.msk [vmem:[#allocation2 + $0x150] sm:$0xff] %vm45, %v983
    %989 = vst.msk [vmem:[#allocation2 + $0x160] sm:$0xf] %vm47, %v985
    %v990 = vld [vmem:[%s640 + $0x1] sm:$0xff]
    %v991 = vld [vmem:[%s640 + $0x9] sm:$0xf]
    %994 = vrot.lane.b32.xlu0 %v990, 27
    %v995 = vpop.permute.xlu0 %994
    %996 = vrot.lane.b32.xlu0 %v991, 27
    %v997 = vpop.permute.xlu0 %996
    %1000 = vst.msk [vmem:[#allocation2 + $0x150] sm:$0xff] %vm59, %v995
    %1001 = vst.msk [vmem:[#allocation2 + $0x160] sm:$0xf] %vm61, %v997
    %v1002 = vld [vmem:[%s640 + $0x2] sm:$0xff]
    %v1003 = vld [vmem:[%s640 + $0xa] sm:$0xf]
    %1006 = vrot.lane.b32.xlu0 %v1002, 59
    %v1007 = vpop.permute.xlu0 %1006
    %1008 = vrot.lane.b32.xlu0 %v1003, 59
    %v1009 = vpop.permute.xlu0 %1008
    %1012 = vst.msk [vmem:[#allocation2 + $0x150] sm:$0xff] %vm73, %v1007
    %1013 = vst.msk [vmem:[#allocation2 + $0x160] sm:$0xf] %vm75, %v1009
    %v1014 = vld [vmem:[%s640 + $0x3] sm:$0xff]
    %v1015 = vld [vmem:[%s640 + $0xb] sm:$0xf]
    %1018 = vrot.lane.b32.xlu0 %v1014, 91
    %v1019 = vpop.permute.xlu0 %1018
    %1020 = vrot.lane.b32.xlu0 %v1015, 91
    %v1021 = vpop.permute.xlu0 %1020
    %1024 = vst.msk [vmem:[#allocation2 + $0x150] sm:$0xff] %vm87, %v1019
    %1025 = vst.msk [vmem:[#allocation2 + $0x160] sm:$0xf] %vm89, %v1021
    %v1026 = vld [vmem:[%s640 + $0x4] sm:$0xff]
    %v1027 = vld [vmem:[%s640 + $0xc] sm:$0xf]
    %1030 = vrot.lane.b32.xlu0 %v1026, 123
    %v1031 = vpop.permute.xlu0 %1030
    %1032 = vrot.lane.b32.xlu0 %v1027, 123
    %v1033 = vpop.permute.xlu0 %1032
    %1036 = vst.msk [vmem:[#allocation2 + $0x158] sm:$0xff] %vm45, %v1031
    %1037 = vst.msk [vmem:[#allocation2 + $0x168] sm:$0xf] %vm47, %v1033
    %v1038 = vld [vmem:[%s640] sm:$0xff]
    %v1039 = vld [vmem:[%s640 + $0x8] sm:$0xf]
    %v1042 = vrot.slane %v1038, 4
    %v1043 = vrot.slane %v1039, 4
    %v1044 = vsel %vm99, %v1042, %v1043
    %1045 = vrot.lane.b32.xlu0 %v1042, 122
    %v1046 = vpop.permute.xlu0 %1045
    %1047 = vrot.lane.b32.xlu0 %v1044, 122
    %v1048 = vpop.permute.xlu0 %1047
    %1051 = vst.msk [vmem:[#allocation2 + $0x160] sm:$0xf0] %vm109, %v1046
    %1052 = vst.msk [vmem:[#allocation2 + $0x170] sm:$0xff] %vm45, %v1048
    %v1053 = vld [vmem:[%s640 + $0x1] sm:$0xff]
    %v1054 = vld [vmem:[%s640 + $0x9] sm:$0xf]
    %v1057 = vrot.slane %v1053, 4
    %v1058 = vrot.slane %v1054, 4
    %v1059 = vsel %vm99, %v1057, %v1058
    %1060 = vrot.lane.b32.xlu0 %v1057, 26
    %v1061 = vpop.permute.xlu0 %1060
    %1062 = vrot.lane.b32.xlu0 %v1059, 26
    %v1063 = vpop.permute.xlu0 %1062
    %1066 = vst.msk [vmem:[#allocation2 + $0x160] sm:$0xf0] %vm125, %v1061
    %1067 = vst.msk [vmem:[#allocation2 + $0x170] sm:$0xff] %vm59, %v1063
    %v1068 = vld [vmem:[%s640 + $0x2] sm:$0xff]
    %v1069 = vld [vmem:[%s640 + $0xa] sm:$0xf]
    %v1072 = vrot.slane %v1068, 4
    %v1073 = vrot.slane %v1069, 4
    %v1074 = vsel %vm99, %v1072, %v1073
    %1075 = vrot.lane.b32.xlu0 %v1072, 58
    %v1076 = vpop.permute.xlu0 %1075
    %1077 = vrot.lane.b32.xlu0 %v1074, 58
    %v1078 = vpop.permute.xlu0 %1077
    %1081 = vst.msk [vmem:[#allocation2 + $0x160] sm:$0xf0] %vm141, %v1076
    %1082 = vst.msk [vmem:[#allocation2 + $0x170] sm:$0xff] %vm73, %v1078
    %v1083 = vld [vmem:[%s640 + $0x3] sm:$0xff]
    %v1084 = vld [vmem:[%s640 + $0xb] sm:$0xf]
    %v1087 = vrot.slane %v1083, 4
    %v1088 = vrot.slane %v1084, 4
    %v1089 = vsel %vm99, %v1087, %v1088
    %1090 = vrot.lane.b32.xlu0 %v1087, 90
    %v1091 = vpop.permute.xlu0 %1090
    %1092 = vrot.lane.b32.xlu0 %v1089, 90
    %v1093 = vpop.permute.xlu0 %1092
    %1096 = vst.msk [vmem:[#allocation2 + $0x160] sm:$0xf0] %vm157, %v1091
    %1097 = vst.msk [vmem:[#allocation2 + $0x170] sm:$0xff] %vm87, %v1093
    %v1098 = vld [vmem:[%s640 + $0x4] sm:$0xff]
    %v1099 = vld [vmem:[%s640 + $0xc] sm:$0xf]
    %v1102 = vrot.slane %v1098, 4
    %v1103 = vrot.slane %v1099, 4
    %v1104 = vsel %vm99, %v1102, %v1103
    %1105 = vrot.lane.b32.xlu0 %v1102, 122
    %v1106 = vpop.permute.xlu0 %1105
    %1107 = vrot.lane.b32.xlu0 %v1104, 122
    %v1108 = vpop.permute.xlu0 %1107
    %1111 = vst.msk [vmem:[#allocation2 + $0x168] sm:$0xf0] %vm109, %v1106
    %1112 = vst.msk [vmem:[#allocation2 + $0x178] sm:$0xff] %vm45, %v1108
    %v1113 = vld [vmem:[%s640] sm:$0xff]
    %v1114 = vld [vmem:[%s640 + $0x8] sm:$0xf]
    %1117 = vrot.lane.b32.xlu0 %v1113, 121
    %v1118 = vpop.permute.xlu0 %1117
    %1119 = vrot.lane.b32.xlu0 %v1114, 121
    %v1120 = vpop.permute.xlu0 %1119
    %1123 = vst.msk [vmem:[#allocation2 + $0x180] sm:$0xff] %vm45, %v1118
    %1124 = vst.msk [vmem:[#allocation2 + $0x190] sm:$0xf] %vm47, %v1120
    %v1125 = vld [vmem:[%s640 + $0x1] sm:$0xff]
    %v1126 = vld [vmem:[%s640 + $0x9] sm:$0xf]
    %1129 = vrot.lane.b32.xlu0 %v1125, 25
    %v1130 = vpop.permute.xlu0 %1129
    %1131 = vrot.lane.b32.xlu0 %v1126, 25
    %v1132 = vpop.permute.xlu0 %1131
    %1135 = vst.msk [vmem:[#allocation2 + $0x180] sm:$0xff] %vm59, %v1130
    %1136 = vst.msk [vmem:[#allocation2 + $0x190] sm:$0xf] %vm61, %v1132
    %v1137 = vld [vmem:[%s640 + $0x2] sm:$0xff]
    %v1138 = vld [vmem:[%s640 + $0xa] sm:$0xf]
    %1141 = vrot.lane.b32.xlu0 %v1137, 57
    %v1142 = vpop.permute.xlu0 %1141
    %1143 = vrot.lane.b32.xlu0 %v1138, 57
    %v1144 = vpop.permute.xlu0 %1143
    %1147 = vst.msk [vmem:[#allocation2 + $0x180] sm:$0xff] %vm73, %v1142
    %1148 = vst.msk [vmem:[#allocation2 + $0x190] sm:$0xf] %vm75, %v1144
    %v1149 = vld [vmem:[%s640 + $0x3] sm:$0xff]
    %v1150 = vld [vmem:[%s640 + $0xb] sm:$0xf]
    %1153 = vrot.lane.b32.xlu0 %v1149, 89
    %v1154 = vpop.permute.xlu0 %1153
    %1155 = vrot.lane.b32.xlu0 %v1150, 89
    %v1156 = vpop.permute.xlu0 %1155
    %1159 = vst.msk [vmem:[#allocation2 + $0x180] sm:$0xff] %vm87, %v1154
    %1160 = vst.msk [vmem:[#allocation2 + $0x190] sm:$0xf] %vm89, %v1156
    %v1161 = vld [vmem:[%s640 + $0x4] sm:$0xff]
    %v1162 = vld [vmem:[%s640 + $0xc] sm:$0xf]
    %1165 = vrot.lane.b32.xlu0 %v1161, 121
    %v1166 = vpop.permute.xlu0 %1165
    %1167 = vrot.lane.b32.xlu0 %v1162, 121
    %v1168 = vpop.permute.xlu0 %1167
    %1171 = vst.msk [vmem:[#allocation2 + $0x188] sm:$0xff] %vm45, %v1166
    %1172 = vst.msk [vmem:[#allocation2 + $0x198] sm:$0xf] %vm47, %v1168
    %v1173 = vld [vmem:[%s640] sm:$0xff]
    %v1174 = vld [vmem:[%s640 + $0x8] sm:$0xf]
    %v1177 = vrot.slane %v1173, 4
    %v1178 = vrot.slane %v1174, 4
    %v1179 = vsel %vm99, %v1177, %v1178
    %1180 = vrot.lane.b32.xlu0 %v1177, 120
    %v1181 = vpop.permute.xlu0 %1180
    %1182 = vrot.lane.b32.xlu0 %v1179, 120
    %v1183 = vpop.permute.xlu0 %1182
    %1186 = vst.msk [vmem:[#allocation2 + $0x190] sm:$0xf0] %vm109, %v1181
    %1187 = vst.msk [vmem:[#allocation2 + $0x1a0] sm:$0xff] %vm45, %v1183
    %v1188 = vld [vmem:[%s640 + $0x1] sm:$0xff]
    %v1189 = vld [vmem:[%s640 + $0x9] sm:$0xf]
    %v1192 = vrot.slane %v1188, 4
    %v1193 = vrot.slane %v1189, 4
    %v1194 = vsel %vm99, %v1192, %v1193
    %1195 = vrot.lane.b32.xlu0 %v1192, 24
    %v1196 = vpop.permute.xlu0 %1195
    %1197 = vrot.lane.b32.xlu0 %v1194, 24
    %v1198 = vpop.permute.xlu0 %1197
    %1201 = vst.msk [vmem:[#allocation2 + $0x190] sm:$0xf0] %vm125, %v1196
    %1202 = vst.msk [vmem:[#allocation2 + $0x1a0] sm:$0xff] %vm59, %v1198
    %v1203 = vld [vmem:[%s640 + $0x2] sm:$0xff]
    %v1204 = vld [vmem:[%s640 + $0xa] sm:$0xf]
    %v1207 = vrot.slane %v1203, 4
    %v1208 = vrot.slane %v1204, 4
    %v1209 = vsel %vm99, %v1207, %v1208
    %1210 = vrot.lane.b32.xlu0 %v1207, 56
    %v1211 = vpop.permute.xlu0 %1210
    %1212 = vrot.lane.b32.xlu0 %v1209, 56
    %v1213 = vpop.permute.xlu0 %1212
    %1216 = vst.msk [vmem:[#allocation2 + $0x190] sm:$0xf0] %vm141, %v1211
    %1217 = vst.msk [vmem:[#allocation2 + $0x1a0] sm:$0xff] %vm73, %v1213
    %v1218 = vld [vmem:[%s640 + $0x3] sm:$0xff]
    %v1219 = vld [vmem:[%s640 + $0xb] sm:$0xf]
    %v1222 = vrot.slane %v1218, 4
    %v1223 = vrot.slane %v1219, 4
    %v1224 = vsel %vm99, %v1222, %v1223
    %1225 = vrot.lane.b32.xlu0 %v1222, 88
    %v1226 = vpop.permute.xlu0 %1225
    %1227 = vrot.lane.b32.xlu0 %v1224, 88
    %v1228 = vpop.permute.xlu0 %1227
    %1231 = vst.msk [vmem:[#allocation2 + $0x190] sm:$0xf0] %vm157, %v1226
    %1232 = vst.msk [vmem:[#allocation2 + $0x1a0] sm:$0xff] %vm87, %v1228
    %v1233 = vld [vmem:[%s640 + $0x4] sm:$0xff]
    %v1234 = vld [vmem:[%s640 + $0xc] sm:$0xf]
    %v1237 = vrot.slane %v1233, 4
    %v1238 = vrot.slane %v1234, 4
    %v1239 = vsel %vm99, %v1237, %v1238
    %1240 = vrot.lane.b32.xlu0 %v1237, 120
    %v1241 = vpop.permute.xlu0 %1240
    %1242 = vrot.lane.b32.xlu0 %v1239, 120
    %v1243 = vpop.permute.xlu0 %1242
    %1246 = vst.msk [vmem:[#allocation2 + $0x198] sm:$0xf0] %vm109, %v1241
    %1247 = vst.msk [vmem:[#allocation2 + $0x1a8] sm:$0xff] %vm45, %v1243
    %v1248 = vld [vmem:[#allocation2] sm:$0xff]
    %v1249 = vld [vmem:[#allocation2 + $0x8] sm:$0xff]
    %v1250 = vld [vmem:[#allocation2 + $0x10] sm:$0xff]
    %v1251 = vld [vmem:[#allocation2 + $0x18] sm:$0xff]
    %v1252 = vld [vmem:[#allocation2 + $0x20] sm:$0xff]
    %v1253 = vld [vmem:[#allocation2 + $0x28] sm:$0xff]
    %v1254 = vld [vmem:[#allocation2 + $0x30] sm:$0xff]
    %v1255 = vld [vmem:[#allocation2 + $0x38] sm:$0xff]
    %v1256 = vld [vmem:[#allocation2 + $0x40] sm:$0xff]
    %v1257 = vld [vmem:[#allocation2 + $0x48] sm:$0xff]
    %v1258 = vld [vmem:[#allocation2 + $0x50] sm:$0xff]
    %v1259 = vld [vmem:[#allocation2 + $0x58] sm:$0xff]
    %v1260 = vld [vmem:[#allocation2 + $0x60] sm:$0xff]
    %v1261 = vld [vmem:[#allocation2 + $0x68] sm:$0xff]
    %v1262 = vld [vmem:[#allocation2 + $0x70] sm:$0xff]
    %v1263 = vld [vmem:[#allocation2 + $0x78] sm:$0xff]
    %v1264 = vld [vmem:[#allocation2 + $0x80] sm:$0xff]
    %v1265 = vld [vmem:[#allocation2 + $0x88] sm:$0xff]
    %v1266 = vld [vmem:[#allocation2 + $0x90] sm:$0xff]
    %v1267 = vld [vmem:[#allocation2 + $0x98] sm:$0xff]
    %v1268 = vld [vmem:[#allocation2 + $0xa0] sm:$0xff]
    %v1269 = vld [vmem:[#allocation2 + $0xa8] sm:$0xff]
    %v1270 = vld [vmem:[#allocation2 + $0xb0] sm:$0xff]
    %v1271 = vld [vmem:[#allocation2 + $0xb8] sm:$0xff]
    %v1272 = vld [vmem:[#allocation2 + $0xc0] sm:$0xff]
    %v1273 = vld [vmem:[#allocation2 + $0xc8] sm:$0xff]
    %v1274 = vld [vmem:[#allocation2 + $0xd0] sm:$0xff]
    %v1275 = vld [vmem:[#allocation2 + $0xd8] sm:$0xff]
    %v1276 = vld [vmem:[#allocation2 + $0xe0] sm:$0xff]
    %v1277 = vld [vmem:[#allocation2 + $0xe8] sm:$0xff]
    %v1278 = vld [vmem:[#allocation2 + $0xf0] sm:$0xff]
    %v1279 = vld [vmem:[#allocation2 + $0xf8] sm:$0xff]
    %v1280 = vld [vmem:[#allocation2 + $0x100] sm:$0xff]
    %v1281 = vld [vmem:[#allocation2 + $0x108] sm:$0xff]
    %v1282 = vld [vmem:[#allocation2 + $0x110] sm:$0xff]
    %v1283 = vld [vmem:[#allocation2 + $0x118] sm:$0xff]
    %v1284 = vld [vmem:[#allocation2 + $0x120] sm:$0xff]
    %v1285 = vld [vmem:[#allocation2 + $0x128] sm:$0xff]
    %v1286 = vld [vmem:[#allocation2 + $0x130] sm:$0xff]
    %v1287 = vld [vmem:[#allocation2 + $0x138] sm:$0xff]
    %v1288 = vld [vmem:[#allocation2 + $0x140] sm:$0xff]
    %v1289 = vld [vmem:[#allocation2 + $0x148] sm:$0xff]
    %v1290 = vld [vmem:[#allocation2 + $0x150] sm:$0xff]
    %v1291 = vld [vmem:[#allocation2 + $0x158] sm:$0xff]
    %v1292 = vld [vmem:[#allocation2 + $0x160] sm:$0xff]
    %v1293 = vld [vmem:[#allocation2 + $0x168] sm:$0xff]
    %v1294 = vld [vmem:[#allocation2 + $0x170] sm:$0xff]
    %v1295 = vld [vmem:[#allocation2 + $0x178] sm:$0xff]
    %v1296 = vld [vmem:[#allocation2 + $0x180] sm:$0xff]
    %v1297 = vld [vmem:[#allocation2 + $0x188] sm:$0xff]
    %v1298 = vld [vmem:[#allocation2 + $0x190] sm:$0xff]
    %v1299 = vld [vmem:[#allocation2 + $0x198] sm:$0xff]
    %v1300 = vld [vmem:[#allocation2 + $0x1a0] sm:$0xff]
    %v1301 = vld [vmem:[#allocation2 + $0x1a8] sm:$0xff]
    %v1302 = vpack.c.bf16 %v1250, %v1248
    %v1303 = vpack.c.bf16 %v1251, %v1249
    %v1304 = vpack.c.bf16 %v1254, %v1252
    %v1305 = vpack.c.bf16 %v1255, %v1253
    %v1306 = vpack.c.bf16 %v1258, %v1256
    %v1307 = vpack.c.bf16 %v1259, %v1257
    %v1308 = vpack.c.bf16 %v1262, %v1260
    %v1309 = vpack.c.bf16 %v1263, %v1261
    %v1310 = vpack.c.bf16 %v1266, %v1264
    %v1311 = vpack.c.bf16 %v1267, %v1265
    %v1312 = vpack.c.bf16 %v1270, %v1268
    %v1313 = vpack.c.bf16 %v1271, %v1269
    %v1314 = vpack.c.bf16 %v1274, %v1272
    %v1315 = vpack.c.bf16 %v1275, %v1273
    %v1316 = vpack.c.bf16 %v1278, %v1276
    %v1317 = vpack.c.bf16 %v1279, %v1277
    %v1318 = vpack.c.bf16 %v1282, %v1280
    %v1319 = vpack.c.bf16 %v1283, %v1281
    %v1320 = vpack.c.bf16 %v1286, %v1284
    %v1321 = vpack.c.bf16 %v1287, %v1285
    %v1322 = vpack.c.bf16 %v1290, %v1288
    %v1323 = vpack.c.bf16 %v1291, %v1289
    %v1324 = vpack.c.bf16 %v1294, %v1292
    %v1325 = vpack.c.bf16 %v1295, %v1293
    %v1326 = vpack.c.bf16 %v1298, %v1296
    %v1327 = vpack.c.bf16 %v1299, %v1297
    %v1328 = vpack.c.bf16 %v1300, %v1300
    %v1329 = vpack.c.bf16 %v1301, %v1301
    %v1330 = vld [vmem:[#allocation5] sm:$0xf]
    %v1331 = vld [vmem:[#allocation5 + $0x4] sm:$0xf]
    %v1332 = vld [vmem:[#allocation5 + $0x8] sm:$0xf]
    %v1333 = vld [vmem:[#allocation5 + $0xc] sm:$0xf]
    %v1334 = vld [vmem:[#allocation5 + $0x10] sm:$0xf]
    %v1335 = vld [vmem:[#allocation5 + $0x14] sm:$0xf]
    %v1336 = vld [vmem:[#allocation5 + $0x18] sm:$0xf]
    %v1337 = vld [vmem:[#allocation5 + $0x1c] sm:$0xf]
    %v1338 = vld [vmem:[#allocation5 + $0x20] sm:$0xf]
    %v1339 = vld [vmem:[#allocation5 + $0x24] sm:$0xf]
    %v1340 = vld [vmem:[#allocation5 + $0x28] sm:$0xf]
    %v1341 = vld [vmem:[#allocation5 + $0x2c] sm:$0xf]
    %v1342 = vld [vmem:[#allocation5 + $0x30] sm:$0xf]
    %v1343 = vld [vmem:[#allocation5 + $0x34] sm:$0xf]
    %v1344 = vld [vmem:[#allocation5 + $0x38] sm:$0xf]
    %v1345 = vld [vmem:[#allocation5 + $0x3c] sm:$0xf]
    %v1346 = vld [vmem:[#allocation5 + $0x40] sm:$0xf]
    %v1347 = vld [vmem:[#allocation5 + $0x44] sm:$0xf]
    %v1348 = vld [vmem:[#allocation5 + $0x48] sm:$0xf]
    %v1349 = vld [vmem:[#allocation5 + $0x4c] sm:$0xf]
    %v1350 = vld [vmem:[%s2] sm:$0x1]
    %v1352 = vlaneseq
    %v1353 = vshrl.u32 %v1352, 7
    %v1354 = vsub.s32 0, %v1353
    %v1355 = vrot.slane %v1350, %v1354
    %v1377 = vunpack.c.l.b16 %v1330
    %v1378 = vunpack.c.l.b16 %v1331
    %v1379 = vunpack.c.l.b16 %v1332
    %v1380 = vunpack.c.l.b16 %v1333
    %v1381 = vunpack.c.l.b16 %v1334
    %v1382 = vunpack.c.l.b16 %v1335
    %v1383 = vunpack.c.l.b16 %v1336
    %v1384 = vunpack.c.l.b16 %v1337
    %v1385 = vunpack.c.l.b16 %v1338
    %v1386 = vunpack.c.l.b16 %v1339
    %v1387 = vunpack.c.l.b16 %v1340
    %v1388 = vunpack.c.l.b16 %v1341
    %v1389 = vunpack.c.l.b16 %v1342
    %v1390 = vunpack.c.l.b16 %v1343
    %v1391 = vunpack.c.l.b16 %v1344
    %v1392 = vunpack.c.l.b16 %v1345
    %v1393 = vunpack.c.l.b16 %v1346
    %v1394 = vunpack.c.l.b16 %v1347
    %v1395 = vunpack.c.l.b16 %v1348
    %v1396 = vunpack.c.l.b16 %v1349
    %v1397 = vpack.c.b16 %v1378, %v1377
    %v1398 = vpack.c.b16 %v1380, %v1379
    %v1399 = vpack.c.b16 %v1382, %v1381
    %v1400 = vpack.c.b16 %v1384, %v1383
    %v1401 = vpack.c.b16 %v1386, %v1385
    %v1402 = vpack.c.b16 %v1388, %v1387
    %v1403 = vpack.c.b16 %v1390, %v1389
    %v1404 = vpack.c.b16 %v1392, %v1391
    %v1405 = vpack.c.b16 %v1394, %v1393
    %v1406 = vpack.c.b16 %v1396, %v1395
    %v1418 = vsel %vm45, %v1303, 0
    %v1421 = vsel %vm45, %v1305, 0
    %v1424 = vsel %vm45, %v1307, 0
    %v1427 = vsel %vm45, %v1309, 0
    %v1430 = vsel %vm45, %v1311, 0
    %v1433 = vsel %vm45, %v1313, 0
    %v1436 = vsel %vm45, %v1315, 0
    %v1439 = vsel %vm45, %v1317, 0
    %v1442 = vsel %vm45, %v1319, 0
    %v1445 = vsel %vm45, %v1321, 0
    %v1448 = vsel %vm45, %v1323, 0
    %v1451 = vsel %vm45, %v1325, 0
    %v1454 = vsel %vm45, %v1327, 0
    %v1457 = vsel %vm45, %v1329, 0
    %1459 = vmatprep.subr.bf16.mxu0 0
    %1460 = vmatpush1.bf16.msra.mxu0 %v1397
    %1461 = vmatprep.subr.bf16.mxu0 0
    %1462 = vmatpush1.bf16.msra.mxu0 %v1398
    %1463 = vmatprep.subr.bf16.mxu0 0
    %1464 = vmatpush1.bf16.msra.mxu0 %v1399
    %1465 = vmatprep.subr.bf16.mxu0 0
    %1466 = vmatpush1.bf16.msra.mxu0 %v1400
    %1467 = vmatprep.subr.bf16.mxu0 0
    %1468 = vmatpush1.bf16.msra.mxu0 %v1401
    %1469 = vmatprep.subr.bf16.mxu0 0
    %1470 = vmatpush1.bf16.msra.mxu0 %v1402
    %1471 = vmatprep.subr.bf16.mxu0 0
    %1472 = vmatpush1.bf16.msra.mxu0 %v1403
    %1473 = vmatprep.subr.bf16.mxu0 0
    %1474 = vmatpush1.bf16.msra.mxu0 %v1404
    %1475 = vmatprep.subr.bf16.mxu0 0
    %1476 = vmatpush1.bf16.msra.mxu0 %v1405
    %1477 = vmatprep.subr.bf16.mxu0 0
    %1478 = vmatpush1.bf16.msra.mxu0 %v1406
    %1479 = vmatprep.subr.bf16.mxu0 0
    %1480 = vmatpush1.bf16.msra.mxu0 0
    %1481 = vmatprep.subr.bf16.mxu0 0
    %1482 = vmatpush1.bf16.msra.mxu0 0
    %1483 = vmatprep.subr.bf16.mxu0 0
    %1484 = vmatpush1.bf16.msra.mxu0 0
    %1485 = vmatprep.subr.bf16.mxu0 0
    %1486 = vmatpush1.bf16.msra.mxu0 0
    %1487 = vmatprep.subr.bf16.mxu0 0
    %1488 = vmatpush1.bf16.msra.mxu0 0
    %1489 = vmatprep.subr.bf16.mxu0 0
    %1490 = vmatpush1.bf16.msra.mxu0 0
    %1491 = vmatprep.mubr.bf16.mxu0 %v1418
    %1492 = vmatmul.mubr.bf16.gmra.mrb[0].mxu0 %v1302
    %v1493 = vpop.f32.mrb[0].mxu0
    %v1494 = vadd.f32 %v1355, %v1493
    %v1495 = vpop.f32.mrb[0].mxu0
    %v1496 = vpop.f32.mrb[0].mxu0
    %v1497 = vadd.f32 %v1355, %v1496
    %v1498 = vpop.f32.mrb[0].mxu0
    %1499 = vmatprep.mubr.bf16.mxu0 %v1421
    %1500 = vmatmul.mubr.bf16.gmra.mrb[0].mxu0 %v1304
    %v1501 = vpop.f32.mrb[0].mxu0
    %v1502 = vadd.f32 %v1355, %v1501
    %v1503 = vpop.f32.mrb[0].mxu0
    %v1504 = vpop.f32.mrb[0].mxu0
    %v1505 = vadd.f32 %v1355, %v1504
    %v1506 = vpop.f32.mrb[0].mxu0
    %1507 = vmatprep.mubr.bf16.mxu0 %v1424
    %1508 = vmatmul.mubr.bf16.gmra.mrb[0].mxu0 %v1306
    %v1509 = vpop.f32.mrb[0].mxu0
    %v1510 = vadd.f32 %v1355, %v1509
    %v1511 = vpop.f32.mrb[0].mxu0
    %v1512 = vpop.f32.mrb[0].mxu0
    %v1513 = vadd.f32 %v1355, %v1512
    %v1514 = vpop.f32.mrb[0].mxu0
    %1515 = vmatprep.mubr.bf16.mxu0 %v1427
    %1516 = vmatmul.mubr.bf16.gmra.mrb[0].mxu0 %v1308
    %v1517 = vpop.f32.mrb[0].mxu0
    %v1518 = vadd.f32 %v1355, %v1517
    %v1519 = vpop.f32.mrb[0].mxu0
    %v1520 = vpop.f32.mrb[0].mxu0
    %v1521 = vadd.f32 %v1355, %v1520
    %v1522 = vpop.f32.mrb[0].mxu0
    %1523 = vmatprep.mubr.bf16.mxu0 %v1430
    %1524 = vmatmul.mubr.bf16.gmra.mrb[0].mxu0 %v1310
    %v1525 = vpop.f32.mrb[0].mxu0
    %v1526 = vadd.f32 %v1355, %v1525
    %v1527 = vpop.f32.mrb[0].mxu0
    %v1528 = vpop.f32.mrb[0].mxu0
    %v1529 = vadd.f32 %v1355, %v1528
    %v1530 = vpop.f32.mrb[0].mxu0
    %1531 = vmatprep.mubr.bf16.mxu0 %v1433
    %1532 = vmatmul.mubr.bf16.gmra.mrb[0].mxu0 %v1312
    %v1533 = vpop.f32.mrb[0].mxu0
    %v1534 = vadd.f32 %v1355, %v1533
    %v1535 = vpop.f32.mrb[0].mxu0
    %v1536 = vpop.f32.mrb[0].mxu0
    %v1537 = vadd.f32 %v1355, %v1536
    %v1538 = vpop.f32.mrb[0].mxu0
    %1539 = vmatprep.mubr.bf16.mxu0 %v1436
    %1540 = vmatmul.mubr.bf16.gmra.mrb[0].mxu0 %v1314
    %v1541 = vpop.f32.mrb[0].mxu0
    %v1542 = vadd.f32 %v1355, %v1541
    %v1543 = vpop.f32.mrb[0].mxu0
    %v1544 = vpop.f32.mrb[0].mxu0
    %v1545 = vadd.f32 %v1355, %v1544
    %v1546 = vpop.f32.mrb[0].mxu0
    %1547 = vmatprep.mubr.bf16.mxu0 %v1439
    %1548 = vmatmul.mubr.bf16.gmra.mrb[0].mxu0 %v1316
    %v1549 = vpop.f32.mrb[0].mxu0
    %v1550 = vadd.f32 %v1355, %v1549
    %v1551 = vpop.f32.mrb[0].mxu0
    %v1552 = vpop.f32.mrb[0].mxu0
    %v1553 = vadd.f32 %v1355, %v1552
    %v1554 = vpop.f32.mrb[0].mxu0
    %1555 = vmatprep.mubr.bf16.mxu0 %v1442
    %1556 = vmatmul.mubr.bf16.gmra.mrb[0].mxu0 %v1318
    %v1557 = vpop.f32.mrb[0].mxu0
    %v1558 = vadd.f32 %v1355, %v1557
    %v1559 = vpop.f32.mrb[0].mxu0
    %v1560 = vpop.f32.mrb[0].mxu0
    %v1561 = vadd.f32 %v1355, %v1560
    %v1562 = vpop.f32.mrb[0].mxu0
    %1563 = vmatprep.mubr.bf16.mxu0 %v1445
    %1564 = vmatmul.mubr.bf16.gmra.mrb[0].mxu0 %v1320
    %v1565 = vpop.f32.mrb[0].mxu0
    %v1566 = vadd.f32 %v1355, %v1565
    %v1567 = vpop.f32.mrb[0].mxu0
    %v1568 = vpop.f32.mrb[0].mxu0
    %v1569 = vadd.f32 %v1355, %v1568
    %v1570 = vpop.f32.mrb[0].mxu0
    %1571 = vmatprep.mubr.bf16.mxu0 %v1448
    %1572 = vmatmul.mubr.bf16.gmra.mrb[0].mxu0 %v1322
    %v1573 = vpop.f32.mrb[0].mxu0
    %v1574 = vadd.f32 %v1355, %v1573
    %v1575 = vpop.f32.mrb[0].mxu0
    %v1576 = vpop.f32.mrb[0].mxu0
    %v1577 = vadd.f32 %v1355, %v1576
    %v1578 = vpop.f32.mrb[0].mxu0
    %1579 = vmatprep.mubr.bf16.mxu0 %v1451
    %1580 = vmatmul.mubr.bf16.gmra.mrb[0].mxu0 %v1324
    %v1581 = vpop.f32.mrb[0].mxu0
    %v1582 = vadd.f32 %v1355, %v1581
    %v1583 = vpop.f32.mrb[0].mxu0
    %v1584 = vpop.f32.mrb[0].mxu0
    %v1585 = vadd.f32 %v1355, %v1584
    %v1586 = vpop.f32.mrb[0].mxu0
    %1587 = vmatprep.mubr.bf16.mxu0 %v1454
    %1588 = vmatmul.mubr.bf16.gmra.mrb[0].mxu0 %v1326
    %v1589 = vpop.f32.mrb[0].mxu0
    %v1590 = vadd.f32 %v1355, %v1589
    %v1591 = vpop.f32.mrb[0].mxu0
    %v1592 = vpop.f32.mrb[0].mxu0
    %v1593 = vadd.f32 %v1355, %v1592
    %v1594 = vpop.f32.mrb[0].mxu0
    %1595 = vmatprep.mubr.bf16.mxu0 %v1457
    %1596 = vmatmul.mubr.bf16.gmra.mrb[0].mxu0 %v1328
    %v1597 = vpop.f32.mrb[0].mxu0
    %v1598 = vadd.f32 %v1355, %v1597
    %v1599 = vpop.f32.mrb[0].mxu0
    %v1600 = vpop.f32.mrb[0].mxu0
    %v1601 = vpop.f32.mrb[0].mxu0
    %1602 = vdwg.mxu0
    %1603 = vst [vmem:[%s3] sm:$0xff] %v1494
    %1604 = vst [vmem:[%s3 + $0x8] sm:$0xff] %v1497
    %1605 = vst [vmem:[%s3 + $0x10] sm:$0xff] %v1502
    %1606 = vst [vmem:[%s3 + $0x18] sm:$0xff] %v1505
    %1607 = vst [vmem:[%s3 + $0x20] sm:$0xff] %v1510
    %1608 = vst [vmem:[%s3 + $0x28] sm:$0xff] %v1513
    %1609 = vst [vmem:[%s3 + $0x30] sm:$0xff] %v1518
    %1610 = vst [vmem:[%s3 + $0x38] sm:$0xff] %v1521
    %1611 = vst [vmem:[%s3 + $0x40] sm:$0xff] %v1526
    %1612 = vst [vmem:[%s3 + $0x48] sm:$0xff] %v1529
    %1613 = vst [vmem:[%s3 + $0x50] sm:$0xff] %v1534
    %1614 = vst [vmem:[%s3 + $0x58] sm:$0xff] %v1537
    %1615 = vst [vmem:[%s3 + $0x60] sm:$0xff] %v1542
    %1616 = vst [vmem:[%s3 + $0x68] sm:$0xff] %v1545
    %1617 = vst [vmem:[%s3 + $0x70] sm:$0xff] %v1550
    %1618 = vst [vmem:[%s3 + $0x78] sm:$0xff] %v1553
    %1619 = vst [vmem:[%s3 + $0x80] sm:$0xff] %v1558
    %1620 = vst [vmem:[%s3 + $0x88] sm:$0xff] %v1561
    %1621 = vst [vmem:[%s3 + $0x90] sm:$0xff] %v1566
    %1622 = vst [vmem:[%s3 + $0x98] sm:$0xff] %v1569
    %1623 = vst [vmem:[%s3 + $0xa0] sm:$0xff] %v1574
    %1624 = vst [vmem:[%s3 + $0xa8] sm:$0xff] %v1577
    %1625 = vst [vmem:[%s3 + $0xb0] sm:$0xff] %v1582
    %1626 = vst [vmem:[%s3 + $0xb8] sm:$0xff] %v1585
    %1627 = vst [vmem:[%s3 + $0xc0] sm:$0xff] %v1590
    %1628 = vst [vmem:[%s3 + $0xc8] sm:$0xff] %v1593
    %1629 = vst [vmem:[%s3 + $0xd0] sm:$0xff] %v1598
    // Predicated region
    $region22: #{_lambda_.1} parent=1 // pred_check
      _
    $region23: #{_lambda_.1} parent=1 // pred_check_branch
      %1631 = sbr.rel (0) target = $region25
    $region24: #{_lambda_.1} parent=1 // pred_region
      _
    $region25: #{_lambda_.1} parent=1 // pred_fallthru
      _
    // Predicated region
    $region26: #{_lambda_.1} parent=1 // pred_check
      _
    $region27: #{_lambda_.1} parent=1 // pred_check_branch
      %1633 = sbr.rel (0) target = $region29
    $region28: #{_lambda_.1} parent=1 // pred_region
      _
    $region29: #{_lambda_.1} parent=1 // pred_fallthru
      _
    %1634 = vsyncpa [#allocation4], 1
    %1635 = vsyncpa [#allocation6], 1

</llo_original>
